<compile_context>
chip_gen: v7x
topology: tpu7x:2x2x1
jax: 0.10.0
libtpu: 0.0.40
codegen_flags: <defaults>
</compile_context>

<pallas_src>
import functools

import jax
import jax.numpy as jnp
from jax import lax
from jax.experimental import pallas as pl
from jax.experimental.pallas import tpu as pltpu

ALPHA = 1.0
GAMMA = 2.0            # gamma == 2 -> implemented as jnp.square
N_CORES = 2            # leading "parallel" grid axis (v7x megacore split)
CHUNK = 256            # rows per inner compute chunk (bounds f32 temporaries)
MAX_TILE_ROWS = 8192   # row cap per block (small-C blocks are compute-bound anyway)
LOGITS_TILE_BYTES = 4 * 1024 * 1024   # native-dtype logits bytes per pipeline buffer


def _round_up(x, m):
    return ((x + m - 1) // m) * m


def _vmem_limit_bytes():
    # 64 MiB on v5e/v6e (128 MiB physical), ~48 MiB on v7x (64 MiB physical).
    cap = 64 * 1024 * 1024
    try:
        cap = int(getattr(pltpu.get_tpu_info(), "vmem_capacity_bytes", cap))
    except Exception:
        pass
    return max(32 * 1024 * 1024, min(64 * 1024 * 1024, cap - 16 * 1024 * 1024))


def _focal_loss_kernel(logits_ref, targets_ref, out_ref, tcol_ref, acc_ref, *,
                       n_total, tile_rows, chunk):
    # logits_ref : (tile_rows, C) native dtype
    # targets_ref: (1, tile_rows) int32 (lane-major)
    # out_ref    : (1, 8, 128) f32 -- one partial-sum block per core
    # tcol_ref   : (tile_rows, 1) int32 scratch (transposed targets)
    # acc_ref    : (chunk, 1) f32 scratch (running per-lane row sums)
    ci = pl.program_id(0)
    si = pl.program_id(1)
    steps = pl.num_programs(1)
    blk = ci * steps + si                       # *unclamped* global row-block index

    @pl.when(si == 0)
    def _init():
        acc_ref[...] = jnp.zeros_like(acc_ref)

    # One small relayout per block: lane-major targets -> a (tile_rows, 1) column.
    tcol_ref[...] = jnp.transpose(targets_ref[...], (1, 0))

    n_chunks = tile_rows // chunk
    n_classes = logits_ref.shape[-1]

    @pl.loop(0, n_chunks)
    def _chunk(j):
        off = pl.multiple_of(j * chunk, chunk)
        xl = logits_ref[pl.ds(off, chunk), :]        # (chunk, C) native dtype
        tgt = tcol_ref[pl.ds(off, chunk), :]         # (chunk, 1) int32

        # Row max and target-class pick are exact in the native dtype (bf16-safe).
        m = jnp.max(xl, axis=-1, keepdims=True).astype(jnp.float32)          # (chunk, 1)
        col = lax.broadcasted_iota(jnp.int32, (chunk, n_classes), 1)
        onehot = col == tgt
        picked = jnp.sum(jnp.where(onehot, xl, jnp.zeros_like(xl)),
                         axis=-1, keepdims=True).astype(jnp.float32)         # (chunk, 1)

        # Numerically-stable log-sum-exp in f32.
        x32 = xl.astype(jnp.float32)
        lse = m + jnp.log(jnp.sum(jnp.exp(x32 - m), axis=-1, keepdims=True))

        ce = jnp.maximum(lse - picked, 0.0)          # clamp fp roundoff
        pt = jnp.exp(-ce)
        focal = ALPHA * jnp.square(1.0 - pt) * ce    # gamma == 2 -> square

        # Mask rows past the true batch end: ragged last block, and the clamped
        # duplicate block the second core sees when n_blocks is odd.
        row = blk * tile_rows + off + lax.broadcasted_iota(jnp.int32, (chunk, 1), 0)
        acc_ref[...] = acc_ref[...] + jnp.where(row < n_total, focal, 0.0)

    @pl.when(si == steps - 1)
    def _finalize():
        # This core's partial sum; the wrapper adds the per-core partials and
        # divides by the true N.  Lane-dense 128-wide store (unmasked vst).
        out_ref[...] = jnp.full(out_ref.shape, jnp.sum(acc_ref[...]), jnp.float32)


def focal_loss(logits, targets, *, tile_rows=None):
    """logits: (N, C) float (any dtype), targets: (N,) int -> scalar f32 mean focal loss."""
    # TODO(synk): only the default reduce=True (mean) path of FocalLoss is implemented.
    n, c = logits.shape
    itemsize = jnp.dtype(logits.dtype).itemsize

    if tile_rows is None:
        tile_rows = LOGITS_TILE_BYTES // max(1, c * itemsize)
    tile_rows = (int(tile_rows) // CHUNK) * CHUNK            # multiple of 256 (lane/chunk aligned)
    tile_rows = max(CHUNK, min(tile_rows, MAX_TILE_ROWS,
                               _round_up(-(-n // N_CORES), CHUNK)))
    # TODO(synk): for very large C (> ~16K f32 classes) the 256-row minimum can
    # overshoot the per-buffer VMEM budget; a narrow-tile fallback would be needed.

    n_blocks = -(-n // tile_rows)
    steps = -(-n_blocks // N_CORES)
    last_blk = n_blocks - 1

    # Targets: lane-major (1, n_pad) int32, padded (cheaply) so every targets
    # block is full and in-bounds.  The (N, C) logits are NOT padded or copied:
    # the ragged last logits block is a partial DMA, masked in-kernel.
    n_pad = n_blocks * tile_rows
    tgt = targets.astype(jnp.int32).reshape(1, n)
    if n_pad != n:
        tgt = jnp.pad(tgt, ((0, 0), (0, n_pad - n)))

    def logits_map(ci, si):
        return (jnp.minimum(ci * steps + si, last_blk), 0)

    def targets_map(ci, si):
        return (0, jnp.minimum(ci * steps + si, last_blk))

    kernel = functools.partial(_focal_loss_kernel, n_total=n,
                               tile_rows=tile_rows, chunk=CHUNK)
    partials = pl.pallas_call(
        kernel,
        out_shape=jax.ShapeDtypeStruct((N_CORES, 8, 128), jnp.float32),
        grid_spec=pltpu.PrefetchScalarGridSpec(
            num_scalar_prefetch=0,
            grid=(N_CORES, steps),
            in_specs=[
                pl.BlockSpec((tile_rows, c), logits_map),
                pl.BlockSpec((1, tile_rows), targets_map),
            ],
            out_specs=pl.BlockSpec((1, 8, 128), lambda ci, si: (ci, 0, 0)),
            scratch_shapes=[
                pltpu.VMEM((tile_rows, 1), jnp.int32),    # transposed targets column
                pltpu.VMEM((CHUNK, 1), jnp.float32),      # per-core running row sums
            ],
        ),
        compiler_params=pltpu.CompilerParams(
            dimension_semantics=("parallel", "arbitrary"),
            vmem_limit_bytes=_vmem_limit_bytes(),
        ),
    )(logits, tgt)

    # Sum the per-core partials and take the mean over the *true* N.
    return jnp.sum(partials[:, 0, 0]) / n


def _reference_focal_loss(logits, targets):
    logp = jax.nn.log_softmax(logits.astype(jnp.float32), axis=-1)
    ce = -jnp.take_along_axis(logp, targets[:, None].astype(jnp.int32), axis=-1)[:, 0]
    pt = jnp.exp(-ce)
    return jnp.mean(ALPHA * (1.0 - pt) ** GAMMA * ce)


if __name__ == "__main__":
    key = jax.random.PRNGKey(0)
    k1, k2, k3, k4 = jax.random.split(key, 4)

    # Case 1: tiny single-block f32 case (second core's block is fully masked).
    N1, C1 = 8, 32
    logits1 = jax.random.normal(k1, (N1, C1), dtype=jnp.float32)
    targets1 = jax.random.randint(k2, (N1,), 0, C1, dtype=jnp.int32)
    loss1 = focal_loss(logits1, targets1)
    jax.block_until_ready(loss1)
    ref1 = _reference_focal_loss(logits1, targets1)
    assert jnp.allclose(loss1, ref1, atol=1e-5, rtol=1e-5), (loss1, ref1)

    # Case 2: multi-block, ragged last block, clamped duplicate block on the
    # second core, and native bf16 logits (no wrapper upcast).
    N2, C2 = 600, 40
    logits2 = jax.random.normal(k3, (N2, C2), dtype=jnp.float32).astype(jnp.bfloat16)
    targets2 = jax.random.randint(k4, (N2,), 0, C2, dtype=jnp.int32)
    loss2 = focal_loss(logits2, targets2, tile_rows=256)   # 3 row-blocks over 2 cores
    jax.block_until_ready(loss2)
    ref2 = _reference_focal_loss(logits2.astype(jnp.float32), targets2)
    assert jnp.allclose(loss2, ref2, atol=1e-5, rtol=1e-5), (loss2, ref2)

    print("KERNEL_OK")
</pallas_src>

<mosaic_0001>
module attributes {stable_mosaic.version = 11 : i64} {
  func.func @_focal_loss_kernel(%arg0: i32, %arg1: i32, %arg2: memref<256x32xf32, #tpu.memory_space<vmem>>, %arg3: memref<1x256xi32, #tpu.memory_space<vmem>>, %arg4: memref<1x8x128xf32, #tpu.memory_space<vmem>>, %arg5: memref<256x1xi32, #tpu.memory_space<vmem>>, %arg6: memref<256x1xf32, #tpu.memory_space<vmem>>) attributes {dimension_semantics = [#tpu.dimension_semantics<parallel>, #tpu.dimension_semantics<arbitrary>], iteration_bounds = array<i64: 2, 1>, scalar_prefetch = 0 : i64, scratch_operands = 2 : i64, tpu.core_type = #tpu.core_type<tc>, window_params = [{transform_indices = @transform_0, window_bounds = array<i64: 256, 32>}, {transform_indices = @transform_1, window_bounds = array<i64: 1, 256>}, {transform_indices = @transform_2, window_bounds = array<i64: 1, 8, 128>}]} {
    %c1_i32 = arith.constant 1 : i32
    %0 = arith.muli %arg0, %c1_i32 : i32
    %1 = arith.addi %0, %arg1 : i32
    %c0_i32 = arith.constant 0 : i32
    %2 = arith.cmpi eq, %arg1, %c0_i32 : i32
    %3 = arith.extui %2 : i1 to i32
    %c0_i32_0 = arith.constant 0 : i32
    %4 = arith.cmpi ne, %3, %c0_i32_0 : i32
    scf.if %4 {
      %cst_25 = arith.constant 0.000000e+00 : f32
      %59 = vector.broadcast %cst_25 : f32 to vector<256x1xf32>
      %c0_26 = arith.constant 0 : index
      %c0_27 = arith.constant 0 : index
      %60 = vector.load %arg6[%c0_26, %c0_27] : memref<256x1xf32, #tpu.memory_space<vmem>>, vector<256x1xf32>
      tpu.vector_store %arg6[%c0_26, %c0_27], %59 {strides = array<i32>} : memref<256x1xf32, #tpu.memory_space<vmem>>, vector<256x1xf32>,
    } else {
    }
    %c0 = arith.constant 0 : index
    %c0_1 = arith.constant 0 : index
    %5 = vector.load %arg3[%c0, %c0_1] : memref<1x256xi32, #tpu.memory_space<vmem>>, vector<1x256xi32>
    %6 = tpu.transpose %5, [1, 0] : vector<1x256xi32> -> vector<256x1xi32>
    %c0_2 = arith.constant 0 : index
    %c0_3 = arith.constant 0 : index
    %7 = vector.load %arg5[%c0_2, %c0_3] : memref<256x1xi32, #tpu.memory_space<vmem>>, vector<256x1xi32>
    tpu.vector_store %arg5[%c0_2, %c0_3], %6 {strides = array<i32>} : memref<256x1xi32, #tpu.memory_space<vmem>>, vector<256x1xi32>,
    %c0_i32_4 = arith.constant 0 : i32
    %c1_i32_5 = arith.constant 1 : i32
    %8 = arith.muli %c0_i32_4, %c1_i32_5 : i32
    %c0_i32_6 = arith.constant 0 : i32
    %9 = arith.addi %c0_i32_6, %8 : i32
    %c256_i32 = arith.constant 256 : i32
    %10 = arith.muli %9, %c256_i32 : i32
    %11 = tpu.assume_multiple %10, 256 : i32
    %12 = arith.index_cast %11 : i32 to index
    %c0_7 = arith.constant 0 : index
    %13 = vector.load %arg2[%12, %c0_7] : memref<256x32xf32, #tpu.memory_space<vmem>>, vector<256x32xf32>
    %14 = arith.index_cast %11 : i32 to index
    %c0_8 = arith.constant 0 : index
    %15 = vector.load %arg5[%14, %c0_8] : memref<256x1xi32, #tpu.memory_space<vmem>>, vector<256x1xi32>
    %cst = arith.constant dense<0xFF800000> : vector<256xf32>
    %16 = vector.multi_reduction <maximumf>, %13, %cst [1] : vector<256x32xf32> to vector<256xf32>
    %17 = vector.shape_cast %16 : vector<256xf32> to vector<256x1xf32>
    %18 = tpu.iota {dimensions = array<i32: 1>} : vector<256x32xi32>
    %19 = vector.broadcast %15 : vector<256x1xi32> to vector<256x32xi32>
    %20 = arith.cmpi eq, %18, %19 : vector<256x32xi32>
    %cst_9 = arith.constant 0.000000e+00 : f32
    %21 = vector.broadcast %cst_9 : f32 to vector<256x32xf32>
    %22 = arith.select %20, %13, %21 : vector<256x32xi1>, vector<256x32xf32>
    %cst_10 = arith.constant dense<0.000000e+00> : vector<256xf32>
    %23 = vector.multi_reduction <add>, %22, %cst_10 [1] : vector<256x32xf32> to vector<256xf32>
    %24 = vector.shape_cast %23 : vector<256xf32> to vector<256x1xf32>
    %25 = vector.broadcast %17 : vector<256x1xf32> to vector<256x32xf32>
    %26 = arith.subf %13, %25 : vector<256x32xf32>
    %27 = math.exp %26 : vector<256x32xf32>
    %cst_11 = arith.constant dense<0.000000e+00> : vector<256xf32>
    %28 = vector.multi_reduction <add>, %27, %cst_11 [1] : vector<256x32xf32> to vector<256xf32>
    %29 = vector.shape_cast %28 : vector<256xf32> to vector<256x1xf32>
    %30 = math.log %29 : vector<256x1xf32>
    %31 = arith.addf %17, %30 : vector<256x1xf32>
    %32 = arith.subf %31, %24 : vector<256x1xf32>
    %cst_12 = arith.constant 0.000000e+00 : f32
    %33 = vector.broadcast %cst_12 : f32 to vector<256x1xf32>
    %34 = arith.maximumf %32, %33 : vector<256x1xf32>
    %cst_13 = arith.constant 0.000000e+00 : f32
    %35 = vector.broadcast %cst_13 : f32 to vector<256x1xf32>
    %36 = arith.subf %35, %34 : vector<256x1xf32>
    %37 = math.exp %36 : vector<256x1xf32>
    %cst_14 = arith.constant 1.000000e+00 : f32
    %38 = vector.broadcast %cst_14 : f32 to vector<256x1xf32>
    %39 = arith.subf %38, %37 : vector<256x1xf32>
    %40 = arith.mulf %39, %39 : vector<256x1xf32>
    %cst_15 = arith.constant 1.000000e+00 : f32
    %41 = vector.broadcast %cst_15 : f32 to vector<256x1xf32>
    %42 = arith.mulf %41, %40 : vector<256x1xf32>
    %43 = arith.mulf %42, %34 : vector<256x1xf32>
    %c256_i32_16 = arith.constant 256 : i32
    %44 = arith.muli %1, %c256_i32_16 : i32
    %45 = arith.addi %44, %11 : i32
    %46 = tpu.iota {dimensions = array<i32: 0>} : vector<256x1xi32>
    %47 = vector.broadcast %45 : i32 to vector<256x1xi32>
    %48 = arith.addi %47, %46 : vector<256x1xi32>
    %c0_17 = arith.constant 0 : index
    %c0_18 = arith.constant 0 : index
    %49 = vector.load %arg6[%c0_17, %c0_18] : memref<256x1xf32, #tpu.memory_space<vmem>>, vector<256x1xf32>
    %c8_i32 = arith.constant 8 : i32
    %50 = vector.broadcast %c8_i32 : i32 to vector<256x1xi32>
    %51 = arith.cmpi slt, %48, %50 : vector<256x1xi32>
    %cst_19 = arith.constant 0.000000e+00 : f32
    %52 = vector.broadcast %cst_19 : f32 to vector<256x1xf32>
    %53 = arith.select %51, %43, %52 : vector<256x1xi1>, vector<256x1xf32>
    %54 = arith.addf %49, %53 : vector<256x1xf32>
    %c0_20 = arith.constant 0 : index
    %c0_21 = arith.constant 0 : index
    %55 = vector.load %arg6[%c0_20, %c0_21] : memref<256x1xf32, #tpu.memory_space<vmem>>, vector<256x1xf32>
    tpu.vector_store %arg6[%c0_20, %c0_21], %54 {strides = array<i32>} : memref<256x1xf32, #tpu.memory_space<vmem>>, vector<256x1xf32>,
    %c1_i32_22 = arith.constant 1 : i32
    %c0_i32_23 = arith.constant 0 : i32
    %56 = arith.cmpi eq, %arg1, %c0_i32_23 : i32
    %57 = arith.extui %56 : i1 to i32
    %c0_i32_24 = arith.constant 0 : i32
    %58 = arith.cmpi ne, %57, %c0_i32_24 : i32
    scf.if %58 {
      %c0_25 = arith.constant 0 : index
      %c0_26 = arith.constant 0 : index
      %59 = vector.load %arg6[%c0_25, %c0_26] : memref<256x1xf32, #tpu.memory_space<vmem>>, vector<256x1xf32>
      %60 = vector.shape_cast %59 : vector<256x1xf32> to vector<1x256x1xf32>
      %cst_27 = arith.constant dense<0.000000e+00> : vector<1xf32>
      %61 = vector.multi_reduction <add>, %60, %cst_27 [1, 2] : vector<1x256x1xf32> to vector<1xf32>
      %62 = vector.shape_cast %61 : vector<1xf32> to vector<1x1x1xf32>
      %63 = vector.extract %62[0, 0, 0] : f32 from vector<1x1x1xf32>
      %64 = vector.broadcast %63 : f32 to vector<1x8x128xf32>
      %c0_28 = arith.constant 0 : index
      %c0_29 = arith.constant 0 : index
      %c0_30 = arith.constant 0 : index
      %65 = vector.load %arg4[%c0_28, %c0_29, %c0_30] : memref<1x8x128xf32, #tpu.memory_space<vmem>>, vector<1x8x128xf32>
      tpu.vector_store %arg4[%c0_28, %c0_29, %c0_30], %64 {strides = array<i32>} : memref<1x8x128xf32, #tpu.memory_space<vmem>>, vector<1x8x128xf32>,
    } else {
    }
    return
  }
  func.func @transform_0(%arg0: i32, %arg1: i32) -> (i32, i32) {
    %c1_i32 = arith.constant 1 : i32
    %0 = arith.muli %arg0, %c1_i32 : i32
    %1 = arith.addi %0, %arg1 : i32
    %c0_i32 = arith.constant 0 : i32
    %2 = arith.minsi %1, %c0_i32 : i32
    %c0_i32_0 = arith.constant 0 : i32
    %c0_i32_1 = arith.constant 0 : i32
    return %2, %c0_i32_0 : i32, i32
  }
  func.func @transform_1(%arg0: i32, %arg1: i32) -> (i32, i32) {
    %c1_i32 = arith.constant 1 : i32
    %0 = arith.muli %arg0, %c1_i32 : i32
    %1 = arith.addi %0, %arg1 : i32
    %c0_i32 = arith.constant 0 : i32
    %2 = arith.minsi %1, %c0_i32 : i32
    %c0_i32_0 = arith.constant 0 : i32
    %c0_i32_1 = arith.constant 0 : i32
    return %c0_i32_0, %2 : i32, i32
  }
  func.func @transform_2(%arg0: i32, %arg1: i32) -> (i32, i32, i32) {
    %c0_i32 = arith.constant 0 : i32
    %c0_i32_0 = arith.constant 0 : i32
    %c0_i32_1 = arith.constant 0 : i32
    return %arg0, %c0_i32, %c0_i32_0 : i32, i32, i32
  }
}

</mosaic_0001>

<llo_original>
// kernel: tpu_custom_call.1
$region0: #{tpu_custom_call.1}
  #allocation0 [shape = 'u32[]', space=smem, size = 0x4, offset = 0x4, fixed_abs, tag = 'smem constant byte address 0x4 - core index']
  #allocation1 [shape = 'u32[144,128]{1,0:T(1,128)}', space=vmem, size = 0x12000, scoped, tag = 'internal scratch']
  #allocation2 [shape = 's32[256,1]{1,0:T(8,128)}', space=vmem, size = 0x20000, scoped, tag = 'scratch operand']
  #allocation3 [shape = 'f32[256,1]{1,0:T(8,128)}', space=vmem, size = 0x20000, scoped, tag = 'scratch operand']
  %s0 = inlined_call_operand.hbm [shape: f32[8,32], index: 0, kind: input, shape index: {}]
  %s1 = inlined_call_operand.vmem [shape: s32[1,256], index: 1, kind: input, shape index: {}]
  %s2 = inlined_call_operand.hbm [shape: f32[2,8,128], index: 2, kind: output, shape index: {}]
  %s3 = sld [smem:[#allocation0]]
  $region53: #{tpu_custom_call.1} parent=0
    _
  %s5 = ssub.s32 1, %s3
  %s6 = scalar_select 0, %s5, %s3
  $region1: #{tpu_custom_call.1} parent=0
    #allocation4 [shape = 'u8[262144]{0}', space=vmem, size = 0x40000, scoped, tag = 'input window, operand 0']
    #allocation5 [shape = 's32[2]{0}', space=sflag, size = 0x8, scoped, tag = 'scoped memory for tpu_custom_call.1']
    #allocation6 [shape = 's32[2]{0}', space=sflag, size = 0x8, scoped, tag = 'scoped memory for tpu_custom_call.1']
    #allocation7 [shape = 'u8[8192]{0}', space=vmem, size = 0x2000, scoped, tag = 'output window, operand 0']
    %7 = vsyncpa [#allocation5], 0
    %s8 = scalar_lea.sflag [#allocation5], 1
    %9 = vsyncpa %s8, 0
    %10 = vsyncpa [#allocation6], 0
    %s11 = scalar_lea.sflag [#allocation6], 1
    %12 = vsyncpa %s11, 0
    loop: start=0, step=1, limit=4
    $region2: #{tpu_custom_call.1} parent=1 // loop_pre_header
      _
    $region3: #{tpu_custom_call.1} parent=1 // loop_header
      %s14 = sphi 0, %s18
      %p15 = scmp.ge.s32.totalorder %s14, 4
      %s21 = sphi 0, %s33
      %s22 = sphi 0, %s29
      %s23 = sphi 0, %s21
      %s24 = sphi 0, %s22
      %s25 = sphi 0, %s23
      %s26 = sphi 0, %s24
      %s42 = sphi 0, %s44
      %s45 = sphi 0, %s42
      %s46 = sphi 0, %s45
      %s62 = sphi 0, %s46
      %s74 = sphi 0, %s76
      %s77 = sphi 0, %s74
      %s78 = sphi 0, %s77
      %s94 = sphi 0, %s78
      %s100 = sphi 0, %s102
      %s103 = sphi 0, %s100
      %s104 = sphi 0, %s103
      %s120 = sphi 0, %s104
    $region4: #{tpu_custom_call.1} parent=1 // loop_header_branch
      %17 = sbr.rel (%p15) target = $region8
    $region5: #{tpu_custom_call.1} parent=1 // loop_body
      %s19 = ssub.s32 %s14, 1
      %s20 = ssub.s32 %s14, 2
      %s27 = sadd.s32 1, %s22
      %p28 = scmp.ge.s32.totalorder %s27, 1
      %s29 = scalar_select %p28, 0, %s27
      %s30 = sadd.s32 1, %s21
      %s31 = scalar_select %p28, %s30, %s21
      %p32 = scmp.ge.s32.totalorder %s31, 2
      %s33 = scalar_select %p32, 0, %s31
      %s34 = sadd.s32 %s21, %s22
      %p35 = scmp.lt.s32.totalorder %s34, 0
      %s36 = scalar_select %p35, %s34, 0
      %s37 = sadd.s32 %s33, %s29
      %p38 = scmp.lt.s32.totalorder %s37, 0
      %s39 = scalar_select %p38, %s37, 0
      %s40 = ssub.s32 %s36, %s39
      %p41 = scmp.eq.s32.totalorder %s40, 0
      %s43 = sadd.s32 %s42, 1
      %s44 = scalar_select %p41, %s42, %s43
      %p47 = pneg %p41
      %p48 = scmp.eq.s32.totalorder %s14, 1
      %p49 = por %p47, %p48
      %p50 = scmp.ne.s32.totalorder %s42, %s45
      %p51 = scmp.eq.s32.totalorder %s14, 0
      %p52 = por %p50, %p51
      %p53 = scmp.ne.s32.totalorder %s42, %s45
      %p54 = scmp.eq.s32.totalorder %s19, 1
      %p55 = por %p53, %p54
      %p56 = scmp.ne.s32.totalorder %s45, %s46
      %p57 = scmp.eq.s32.totalorder %s19, 0
      %p58 = por %p56, %p57
      %p59 = scmp.ne.s32.totalorder %s45, %s46
      %p60 = scmp.eq.s32.totalorder %s20, 1
      %p61 = por %p59, %p60
      %p63 = scmp.ne.s32.totalorder %s46, %s62
      %p64 = scmp.eq.s32.totalorder %s20, 0
      %p65 = por %p63, %p64
      %s66 = sadd.s32 %s21, %s22
      %p67 = scmp.lt.s32.totalorder %s66, 0
      %s68 = scalar_select %p67, %s66, 0
      %s69 = sadd.s32 %s33, %s29
      %p70 = scmp.lt.s32.totalorder %s69, 0
      %s71 = scalar_select %p70, %s69, 0
      %s72 = ssub.s32 %s68, %s71
      %p73 = scmp.eq.s32.totalorder %s72, 0
      %s75 = sadd.s32 %s74, 1
      %s76 = scalar_select %p73, %s74, %s75
      %p79 = pneg %p73
      %p80 = scmp.eq.s32.totalorder %s14, 1
      %p81 = por %p79, %p80
      %p82 = scmp.ne.s32.totalorder %s74, %s77
      %p83 = scmp.eq.s32.totalorder %s14, 0
      %p84 = por %p82, %p83
      %p85 = scmp.ne.s32.totalorder %s74, %s77
      %p86 = scmp.eq.s32.totalorder %s19, 1
      %p87 = por %p85, %p86
      %p88 = scmp.ne.s32.totalorder %s77, %s78
      %p89 = scmp.eq.s32.totalorder %s19, 0
      %p90 = por %p88, %p89
      %p91 = scmp.ne.s32.totalorder %s77, %s78
      %p92 = scmp.eq.s32.totalorder %s20, 1
      %p93 = por %p91, %p92
      %p95 = scmp.ne.s32.totalorder %s78, %s94
      %p96 = scmp.eq.s32.totalorder %s20, 0
      %p97 = por %p95, %p96
      %s98 = ssub.s32 %s21, %s33
      %p99 = scmp.eq.s32.totalorder %s98, 0
      %s101 = sadd.s32 %s100, 1
      %s102 = scalar_select %p99, %s100, %s101
      %p105 = pneg %p99
      %p106 = scmp.eq.s32.totalorder %s14, 1
      %p107 = por %p105, %p106
      %p108 = scmp.ne.s32.totalorder %s100, %s103
      %p109 = scmp.eq.s32.totalorder %s14, 0
      %p110 = por %p108, %p109
      %p111 = scmp.ne.s32.totalorder %s100, %s103
      %p112 = scmp.eq.s32.totalorder %s19, 1
      %p113 = por %p111, %p112
      %p114 = scmp.ne.s32.totalorder %s103, %s104
      %p115 = scmp.eq.s32.totalorder %s19, 0
      %p116 = por %p114, %p115
      %p117 = scmp.ne.s32.totalorder %s103, %s104
      %p118 = scmp.eq.s32.totalorder %s20, 1
      %p119 = por %p117, %p118
      %p121 = scmp.ne.s32.totalorder %s104, %s120
      %p122 = scmp.eq.s32.totalorder %s20, 0
      %p123 = por %p121, %p122
      %p124 = scmp.le.s32.totalorder 1, %s14
      %p125 = scmp.lt.s32.totalorder %s14, 3
      %p126 = pnand %p124, %p125
      %p127 = pneg %p126
      // Predicated region
      $region9: #{tpu_custom_call.1} parent=5 // pred_check
        _
      $region10: #{tpu_custom_call.1} parent=5 // pred_check_branch
        %129 = sbr.rel (%p126) target = $region12
      $region11: #{tpu_custom_call.1} parent=5 // pred_region
        %s130 = ssub.s32 %s14, 1
      $region12: #{tpu_custom_call.1} parent=5 // pred_fallthru
        _
      %p131 = scmp.lt.s32.totalorder %s14, 2
      // Predicated region
      $region13: #{tpu_custom_call.1} parent=5 // pred_check
        %p132 = pneg %p131
      $region14: #{tpu_custom_call.1} parent=5 // pred_check_branch
        %134 = sbr.rel (%p132) target = $region16
      $region15: #{tpu_custom_call.1} parent=5 // pred_region
        // Predicated region
        $region17: #{tpu_custom_call.1} parent=15 // pred_check
          %p135 = pneg %p52
        $region18: #{tpu_custom_call.1} parent=15 // pred_check_branch
          %137 = sbr.rel (%p135) target = $region20
        $region19: #{tpu_custom_call.1} parent=15 // pred_region
          %s138 = sand.u32 %s42, 1
          %s139 = scalar_lea.sflag [#allocation5], %s138
          %s140 = sand.u32 %s42, 1
          %s141 = smul.addr %s140, 256
          %s142 = scalar_lea.vmem [#allocation4], %s141
          %s143 = sadd.s32 %s21, %s22
          %p144 = scmp.lt.s32.totalorder %s143, 0
          %s145 = scalar_select %p144, %s143, 0
          %s146 = smul.u32 32, %s145
          %s147 = ssub.s32 1, %s146
          %s148 = smul.u32 128, %s147
          %s150 = ssub.s32 4096, %s148
          %151 = vsyncadd %s139, %s150
          %p152 = scmp.ne.s32.totalorder 0, %s148
          %s153 = smul.addr %s146, 128
          %s154 = scalar_lea.hbm %s0, %s153
          %s155 = smul.u32 8, %s147
          %s156 = sshll.u32 %s142, 4
          %s157 = int_to_ptr.vmem [resolvable:$true] %s156
          %s158 = sshll.u32 %s155, 4
          %162 = dma.hbm_to_vmem [thread:$0]  (%p152), %s154, %s158, %s157, %s139, 128, 128, 8
        $region20: #{tpu_custom_call.1} parent=15 // pred_fallthru
          _
        // Predicated region
        $region21: #{tpu_custom_call.1} parent=15 // pred_check
          %p163 = pneg %p84
        $region22: #{tpu_custom_call.1} parent=15 // pred_check_branch
          %165 = sbr.rel (%p163) target = $region24
        $region23: #{tpu_custom_call.1} parent=15 // pred_region
          %s166 = sadd.s32 %s21, %s22
          %p167 = scmp.lt.s32.totalorder %s166, 0
          %s168 = scalar_select %p167, %s166, 0
          %s169 = smul.u32 2, %s168
          %p170 = scmp.lt.s32.totalorder %s169, 1
          %s171 = scalar_select %p170, %s169, 1
          %s172 = scalar_lea.vmem %s1, %s171
          %s173 = sadd.s32 %s21, %s22
          %p174 = scmp.lt.s32.totalorder %s173, 0
          %s175 = scalar_select %p174, %s173, 0
          %s176 = smul.u32 2, %s175
        $region24: #{tpu_custom_call.1} parent=15 // pred_fallthru
          _
      $region16: #{tpu_custom_call.1} parent=5 // pred_fallthru
        _
      %p177 = scmp.le.s32.totalorder 1, %s14
      %p178 = scmp.lt.s32.totalorder %s14, 3
      %p179 = pnand %p177, %p178
      %p180 = pneg %p179
      // Predicated region
      $region25: #{tpu_custom_call.1} parent=5 // pred_check
        _
      $region26: #{tpu_custom_call.1} parent=5 // pred_check_branch
        %182 = sbr.rel (%p179) target = $region28
      $region27: #{tpu_custom_call.1} parent=5 // pred_region
        %s183 = ssub.s32 %s14, 1
        %s184 = sand.u32 %s45, 1
        %s185 = scalar_lea.sflag [#allocation5], %s184
        %s186 = sand.u32 %s45, 1
        %s187 = smul.addr %s186, 256
        %s188 = scalar_lea.vmem [#allocation4], %s187
        // Predicated region
        $region29: #{tpu_custom_call.1} parent=27 // pred_check
          %p189 = pneg %p58
        $region30: #{tpu_custom_call.1} parent=27 // pred_check_branch
          %191 = sbr.rel (%p189) target = $region32
        $region31: #{tpu_custom_call.1} parent=27 // pred_region
          %192 = dma.done %s185, 4096
        $region32: #{tpu_custom_call.1} parent=27 // pred_fallthru
          _
        %s193 = sand.u32 %s45, 1
        %s194 = scalar_lea.sflag [#allocation5], %s193
        %s195 = sand.u32 %s45, 1
        %s196 = smul.addr %s195, 256
        %s197 = scalar_lea.vmem [#allocation4], %s196
        %p198 = pneg %p58
        %p199 = pneg %p55
        %s200 = sadd.s32 %s23, %s24
        %p201 = scmp.lt.s32.totalorder %s200, 0
        %s202 = scalar_select %p201, %s200, 0
        %s203 = smul.u32 2, %s202
        %p204 = scmp.lt.s32.totalorder %s203, 1
        %s205 = scalar_select %p204, %s203, 1
        %s206 = scalar_lea.vmem %s1, %s205
        %p207 = pneg %p90
        %p208 = pneg %p87
        %p209 = pneg %p116
        %p210 = pneg %p113
        %s211 = sand.u32 %s103, 1
        %s212 = scalar_lea.sflag [#allocation6], %s211
        %s213 = sand.u32 %s103, 1
        %s214 = smul.addr %s213, 8
        %s215 = scalar_lea.vmem [#allocation7], %s214
        %s216 = sadd.s32 %s23, %s24
        %p217 = scmp.lt.s32.totalorder %s216, 0
        %s218 = scalar_select %p217, %s216, 0
        %s219 = smul.u32 32, %s218
        %s220 = ssub.s32 1, %s219
        %s221 = smul.u32 128, %s220
        %s222 = sadd.s32 %s23, %s24
        %p223 = scmp.lt.s32.totalorder %s222, 0
        %s224 = scalar_select %p223, %s222, 0
        %s225 = smul.u32 2, %s224
        %p226 = scmp.lt.s32.totalorder %s225, 1
        %s227 = scalar_select %p226, %s225, 1
        %s228 = scalar_lea.vmem %s1, %s227
        %s229 = sadd.s32 %s23, %s24
        %p230 = scmp.lt.s32.totalorder %s229, 0
        %s231 = scalar_select %p230, %s229, 0
        %s232 = smul.u32 2, %s231
        %s233 = sadd.s32 %s23, %s24
        %p234 = scmp.eq.s32.totalorder %s24, 0
        // Predicated region
        $region33: #{tpu_custom_call.1} parent=27 // pred_check
          %p235 = pneg %p234
        $region34: #{tpu_custom_call.1} parent=27 // pred_check_branch
          %237 = sbr.rel (%p235) target = $region36
        $region35: #{tpu_custom_call.1} parent=27 // pred_region
          %vm238 = vcmask 7168
          %239 = vst.msk [vmem:[#allocation3] sm:$0xff] %vm238, 0.0
          %240 = vst.msk [vmem:[#allocation3 + $0x8] sm:$0xff] %vm238, 0.0
          %241 = vst.msk [vmem:[#allocation3 + $0x10] sm:$0xff] %vm238, 0.0
          %242 = vst.msk [vmem:[#allocation3 + $0x18] sm:$0xff] %vm238, 0.0
          %243 = vst.msk [vmem:[#allocation3 + $0x20] sm:$0xff] %vm238, 0.0
          %244 = vst.msk [vmem:[#allocation3 + $0x28] sm:$0xff] %vm238, 0.0
          %245 = vst.msk [vmem:[#allocation3 + $0x30] sm:$0xff] %vm238, 0.0
          %246 = vst.msk [vmem:[#allocation3 + $0x38] sm:$0xff] %vm238, 0.0
          %247 = vst.msk [vmem:[#allocation3 + $0x40] sm:$0xff] %vm238, 0.0
          %248 = vst.msk [vmem:[#allocation3 + $0x48] sm:$0xff] %vm238, 0.0
          %249 = vst.msk [vmem:[#allocation3 + $0x50] sm:$0xff] %vm238, 0.0
          %250 = vst.msk [vmem:[#allocation3 + $0x58] sm:$0xff] %vm238, 0.0
          %251 = vst.msk [vmem:[#allocation3 + $0x60] sm:$0xff] %vm238, 0.0
          %252 = vst.msk [vmem:[#allocation3 + $0x68] sm:$0xff] %vm238, 0.0
          %253 = vst.msk [vmem:[#allocation3 + $0x70] sm:$0xff] %vm238, 0.0
          %254 = vst.msk [vmem:[#allocation3 + $0x78] sm:$0xff] %vm238, 0.0
          %255 = vst.msk [vmem:[#allocation3 + $0x80] sm:$0xff] %vm238, 0.0
          %256 = vst.msk [vmem:[#allocation3 + $0x88] sm:$0xff] %vm238, 0.0
          %257 = vst.msk [vmem:[#allocation3 + $0x90] sm:$0xff] %vm238, 0.0
          %258 = vst.msk [vmem:[#allocation3 + $0x98] sm:$0xff] %vm238, 0.0
          %259 = vst.msk [vmem:[#allocation3 + $0xa0] sm:$0xff] %vm238, 0.0
          %260 = vst.msk [vmem:[#allocation3 + $0xa8] sm:$0xff] %vm238, 0.0
          %261 = vst.msk [vmem:[#allocation3 + $0xb0] sm:$0xff] %vm238, 0.0
          %262 = vst.msk [vmem:[#allocation3 + $0xb8] sm:$0xff] %vm238, 0.0
          %263 = vst.msk [vmem:[#allocation3 + $0xc0] sm:$0xff] %vm238, 0.0
          %264 = vst.msk [vmem:[#allocation3 + $0xc8] sm:$0xff] %vm238, 0.0
          %265 = vst.msk [vmem:[#allocation3 + $0xd0] sm:$0xff] %vm238, 0.0
          %266 = vst.msk [vmem:[#allocation3 + $0xd8] sm:$0xff] %vm238, 0.0
          %267 = vst.msk [vmem:[#allocation3 + $0xe0] sm:$0xff] %vm238, 0.0
          %268 = vst.msk [vmem:[#allocation3 + $0xe8] sm:$0xff] %vm238, 0.0
          %269 = vst.msk [vmem:[#allocation3 + $0xf0] sm:$0xff] %vm238, 0.0
          %270 = vst.msk [vmem:[#allocation3 + $0xf8] sm:$0xff] %vm238, 0.0
        $region36: #{tpu_custom_call.1} parent=27 // pred_fallthru
          _
        %v271 = vld [vmem:[%s228] sm:$0x3]
        %v272 = vlaneseq
        %v273 = vshrl.u32 %v272, 7
        %v274 = vsub.s32 0, %v273
        %v275 = vrot.slane %v271, %v274
        %v276 = vlaneseq
        %v277 = vshrl.u32 %v276, 7
        %v278 = vsub.s32 1, %v277
        %v279 = vrot.slane %v271, %v278
        %280 = vxpose.xlu0.b32.start [1/16] %v275, 128
        %281 = vxpose.xlu0.b32.cont [2/16] 0, 128
        %282 = vxpose.xlu0.b32.cont [3/16] 0, 128
        %283 = vxpose.xlu0.b32.cont [4/16] 0, 128
        %284 = vxpose.xlu0.b32.cont [5/16] 0, 128
        %285 = vxpose.xlu0.b32.cont [6/16] 0, 128
        %286 = vxpose.xlu0.b32.cont [7/16] 0, 128
        %287 = vxpose.xlu0.b32.cont [8/16] 0, 128
        %288 = vxpose.xlu0.b32.cont [9/16] 0, 128
        %289 = vxpose.xlu0.b32.cont [10/16] 0, 128
        %290 = vxpose.xlu0.b32.cont [11/16] 0, 128
        %291 = vxpose.xlu0.b32.cont [12/16] 0, 128
        %292 = vxpose.xlu0.b32.cont [13/16] 0, 128
        %293 = vxpose.xlu0.b32.cont [14/16] 0, 128
        %294 = vxpose.xlu0.b32.cont [15/16] 0, 128
        %295 = vxpose.xlu0.b32.end [16/16] 0, 128
        %v296 = vpop.trf.xlu0
        %v297 = vpop.trf.xlu0
        %v298 = vpop.trf.xlu0
        %v299 = vpop.trf.xlu0
        %v300 = vpop.trf.xlu0
        %v301 = vpop.trf.xlu0
        %v302 = vpop.trf.xlu0
        %v303 = vpop.trf.xlu0
        %v304 = vpop.trf.xlu0
        %v305 = vpop.trf.xlu0
        %v306 = vpop.trf.xlu0
        %v307 = vpop.trf.xlu0
        %v308 = vpop.trf.xlu0
        %v309 = vpop.trf.xlu0
        %v310 = vpop.trf.xlu0
        %v311 = vpop.trf.xlu0
        %312 = vxpose.xlu0.b32.start [1/16] %v279, 128
        %313 = vxpose.xlu0.b32.cont [2/16] 0, 128
        %314 = vxpose.xlu0.b32.cont [3/16] 0, 128
        %315 = vxpose.xlu0.b32.cont [4/16] 0, 128
        %316 = vxpose.xlu0.b32.cont [5/16] 0, 128
        %317 = vxpose.xlu0.b32.cont [6/16] 0, 128
        %318 = vxpose.xlu0.b32.cont [7/16] 0, 128
        %319 = vxpose.xlu0.b32.cont [8/16] 0, 128
        %320 = vxpose.xlu0.b32.cont [9/16] 0, 128
        %321 = vxpose.xlu0.b32.cont [10/16] 0, 128
        %322 = vxpose.xlu0.b32.cont [11/16] 0, 128
        %323 = vxpose.xlu0.b32.cont [12/16] 0, 128
        %324 = vxpose.xlu0.b32.cont [13/16] 0, 128
        %325 = vxpose.xlu0.b32.cont [14/16] 0, 128
        %326 = vxpose.xlu0.b32.cont [15/16] 0, 128
        %327 = vxpose.xlu0.b32.end [16/16] 0, 128
        %v328 = vpop.trf.xlu0
        %v329 = vpop.trf.xlu0
        %v330 = vpop.trf.xlu0
        %v331 = vpop.trf.xlu0
        %v332 = vpop.trf.xlu0
        %v333 = vpop.trf.xlu0
        %v334 = vpop.trf.xlu0
        %v335 = vpop.trf.xlu0
        %v336 = vpop.trf.xlu0
        %v337 = vpop.trf.xlu0
        %v338 = vpop.trf.xlu0
        %v339 = vpop.trf.xlu0
        %v340 = vpop.trf.xlu0
        %v341 = vpop.trf.xlu0
        %v342 = vpop.trf.xlu0
        %v343 = vpop.trf.xlu0
        %vm344 = vcmask 7168
        %345 = vst.msk [vmem:[#allocation2] sm:$0xff] %vm344, %v296
        %346 = vst.msk [vmem:[#allocation2 + $0x8] sm:$0xff] %vm344, %v297
        %347 = vst.msk [vmem:[#allocation2 + $0x10] sm:$0xff] %vm344, %v298
        %348 = vst.msk [vmem:[#allocation2 + $0x18] sm:$0xff] %vm344, %v299
        %349 = vst.msk [vmem:[#allocation2 + $0x20] sm:$0xff] %vm344, %v300
        %350 = vst.msk [vmem:[#allocation2 + $0x28] sm:$0xff] %vm344, %v301
        %351 = vst.msk [vmem:[#allocation2 + $0x30] sm:$0xff] %vm344, %v302
        %352 = vst.msk [vmem:[#allocation2 + $0x38] sm:$0xff] %vm344, %v303
        %353 = vst.msk [vmem:[#allocation2 + $0x40] sm:$0xff] %vm344, %v304
        %354 = vst.msk [vmem:[#allocation2 + $0x48] sm:$0xff] %vm344, %v305
        %355 = vst.msk [vmem:[#allocation2 + $0x50] sm:$0xff] %vm344, %v306
        %356 = vst.msk [vmem:[#allocation2 + $0x58] sm:$0xff] %vm344, %v307
        %357 = vst.msk [vmem:[#allocation2 + $0x60] sm:$0xff] %vm344, %v308
        %358 = vst.msk [vmem:[#allocation2 + $0x68] sm:$0xff] %vm344, %v309
        %359 = vst.msk [vmem:[#allocation2 + $0x70] sm:$0xff] %vm344, %v310
        %360 = vst.msk [vmem:[#allocation2 + $0x78] sm:$0xff] %vm344, %v311
        %361 = vst.msk [vmem:[#allocation2 + $0x80] sm:$0xff] %vm344, %v328
        %362 = vst.msk [vmem:[#allocation2 + $0x88] sm:$0xff] %vm344, %v329
        %363 = vst.msk [vmem:[#allocation2 + $0x90] sm:$0xff] %vm344, %v330
        %364 = vst.msk [vmem:[#allocation2 + $0x98] sm:$0xff] %vm344, %v331
        %365 = vst.msk [vmem:[#allocation2 + $0xa0] sm:$0xff] %vm344, %v332
        %366 = vst.msk [vmem:[#allocation2 + $0xa8] sm:$0xff] %vm344, %v333
        %367 = vst.msk [vmem:[#allocation2 + $0xb0] sm:$0xff] %vm344, %v334
        %368 = vst.msk [vmem:[#allocation2 + $0xb8] sm:$0xff] %vm344, %v335
        %369 = vst.msk [vmem:[#allocation2 + $0xc0] sm:$0xff] %vm344, %v336
        %370 = vst.msk [vmem:[#allocation2 + $0xc8] sm:$0xff] %vm344, %v337
        %371 = vst.msk [vmem:[#allocation2 + $0xd0] sm:$0xff] %vm344, %v338
        %372 = vst.msk [vmem:[#allocation2 + $0xd8] sm:$0xff] %vm344, %v339
        %373 = vst.msk [vmem:[#allocation2 + $0xe0] sm:$0xff] %vm344, %v340
        %374 = vst.msk [vmem:[#allocation2 + $0xe8] sm:$0xff] %vm344, %v341
        %375 = vst.msk [vmem:[#allocation2 + $0xf0] sm:$0xff] %vm344, %v342
        %376 = vst.msk [vmem:[#allocation2 + $0xf8] sm:$0xff] %vm344, %v343
        %v377 = vld [vmem:[%s188] sm:$0xff]
        %v378 = vld [vmem:[%s188 + $0x8] sm:$0xff]
        %v379 = vld [vmem:[%s188 + $0x10] sm:$0xff]
        %v380 = vld [vmem:[%s188 + $0x18] sm:$0xff]
        %v381 = vld [vmem:[%s188 + $0x20] sm:$0xff]
        %v382 = vld [vmem:[%s188 + $0x28] sm:$0xff]
        %v383 = vld [vmem:[%s188 + $0x30] sm:$0xff]
        %v384 = vld [vmem:[%s188 + $0x38] sm:$0xff]
        %v385 = vld [vmem:[%s188 + $0x40] sm:$0xff]
        %v386 = vld [vmem:[%s188 + $0x48] sm:$0xff]
        %v387 = vld [vmem:[%s188 + $0x50] sm:$0xff]
        %v388 = vld [vmem:[%s188 + $0x58] sm:$0xff]
        %v389 = vld [vmem:[%s188 + $0x60] sm:$0xff]
        %v390 = vld [vmem:[%s188 + $0x68] sm:$0xff]
        %v391 = vld [vmem:[%s188 + $0x70] sm:$0xff]
        %v392 = vld [vmem:[%s188 + $0x78] sm:$0xff]
        %v393 = vld [vmem:[%s188 + $0x80] sm:$0xff]
        %v394 = vld [vmem:[%s188 + $0x88] sm:$0xff]
        %v395 = vld [vmem:[%s188 + $0x90] sm:$0xff]
        %v396 = vld [vmem:[%s188 + $0x98] sm:$0xff]
        %v397 = vld [vmem:[%s188 + $0xa0] sm:$0xff]
        %v398 = vld [vmem:[%s188 + $0xa8] sm:$0xff]
        %v399 = vld [vmem:[%s188 + $0xb0] sm:$0xff]
        %v400 = vld [vmem:[%s188 + $0xb8] sm:$0xff]
        %v401 = vld [vmem:[%s188 + $0xc0] sm:$0xff]
        %v402 = vld [vmem:[%s188 + $0xc8] sm:$0xff]
        %v403 = vld [vmem:[%s188 + $0xd0] sm:$0xff]
        %v404 = vld [vmem:[%s188 + $0xd8] sm:$0xff]
        %v405 = vld [vmem:[%s188 + $0xe0] sm:$0xff]
        %v406 = vld [vmem:[%s188 + $0xe8] sm:$0xff]
        %v407 = vld [vmem:[%s188 + $0xf0] sm:$0xff]
        %v408 = vld [vmem:[%s188 + $0xf8] sm:$0xff]
        %v409 = vld [vmem:[#allocation2] sm:$0xff]
        %v410 = vld [vmem:[#allocation2 + $0x8] sm:$0xff]
        %v411 = vld [vmem:[#allocation2 + $0x10] sm:$0xff]
        %v412 = vld [vmem:[#allocation2 + $0x18] sm:$0xff]
        %v413 = vld [vmem:[#allocation2 + $0x20] sm:$0xff]
        %v414 = vld [vmem:[#allocation2 + $0x28] sm:$0xff]
        %v415 = vld [vmem:[#allocation2 + $0x30] sm:$0xff]
        %v416 = vld [vmem:[#allocation2 + $0x38] sm:$0xff]
        %v417 = vld [vmem:[#allocation2 + $0x40] sm:$0xff]
        %v418 = vld [vmem:[#allocation2 + $0x48] sm:$0xff]
        %v419 = vld [vmem:[#allocation2 + $0x50] sm:$0xff]
        %v420 = vld [vmem:[#allocation2 + $0x58] sm:$0xff]
        %v421 = vld [vmem:[#allocation2 + $0x60] sm:$0xff]
        %v422 = vld [vmem:[#allocation2 + $0x68] sm:$0xff]
        %v423 = vld [vmem:[#allocation2 + $0x70] sm:$0xff]
        %v424 = vld [vmem:[#allocation2 + $0x78] sm:$0xff]
        %v425 = vld [vmem:[#allocation2 + $0x80] sm:$0xff]
        %v426 = vld [vmem:[#allocation2 + $0x88] sm:$0xff]
        %v427 = vld [vmem:[#allocation2 + $0x90] sm:$0xff]
        %v428 = vld [vmem:[#allocation2 + $0x98] sm:$0xff]
        %v429 = vld [vmem:[#allocation2 + $0xa0] sm:$0xff]
        %v430 = vld [vmem:[#allocation2 + $0xa8] sm:$0xff]
        %v431 = vld [vmem:[#allocation2 + $0xb0] sm:$0xff]
        %v432 = vld [vmem:[#allocation2 + $0xb8] sm:$0xff]
        %v433 = vld [vmem:[#allocation2 + $0xc0] sm:$0xff]
        %v434 = vld [vmem:[#allocation2 + $0xc8] sm:$0xff]
        %v435 = vld [vmem:[#allocation2 + $0xd0] sm:$0xff]
        %v436 = vld [vmem:[#allocation2 + $0xd8] sm:$0xff]
        %v437 = vld [vmem:[#allocation2 + $0xe0] sm:$0xff]
        %v438 = vld [vmem:[#allocation2 + $0xe8] sm:$0xff]
        %v439 = vld [vmem:[#allocation2 + $0xf0] sm:$0xff]
        %v440 = vld [vmem:[#allocation2 + $0xf8] sm:$0xff]
        %vm441 = vcmask 261120
        %v442 = vsel %vm441, %v377, -inf
        %443 = vmax.xlane.f32.xlu0 %v442
        %v444 = vpop.xlane.xlu0 %443
        %v445 = vsel %vm441, %v378, -inf
        %446 = vmax.xlane.f32.xlu0 %v445
        %v447 = vpop.xlane.xlu0 %446
        %v448 = vsel %vm441, %v379, -inf
        %449 = vmax.xlane.f32.xlu0 %v448
        %v450 = vpop.xlane.xlu0 %449
        %v451 = vsel %vm441, %v380, -inf
        %452 = vmax.xlane.f32.xlu0 %v451
        %v453 = vpop.xlane.xlu0 %452
        %v454 = vsel %vm441, %v381, -inf
        %455 = vmax.xlane.f32.xlu0 %v454
        %v456 = vpop.xlane.xlu0 %455
        %v457 = vsel %vm441, %v382, -inf
        %458 = vmax.xlane.f32.xlu0 %v457
        %v459 = vpop.xlane.xlu0 %458
        %v460 = vsel %vm441, %v383, -inf
        %461 = vmax.xlane.f32.xlu0 %v460
        %v462 = vpop.xlane.xlu0 %461
        %v463 = vsel %vm441, %v384, -inf
        %464 = vmax.xlane.f32.xlu0 %v463
        %v465 = vpop.xlane.xlu0 %464
        %v466 = vsel %vm441, %v385, -inf
        %467 = vmax.xlane.f32.xlu0 %v466
        %v468 = vpop.xlane.xlu0 %467
        %v469 = vsel %vm441, %v386, -inf
        %470 = vmax.xlane.f32.xlu0 %v469
        %v471 = vpop.xlane.xlu0 %470
        %v472 = vsel %vm441, %v387, -inf
        %473 = vmax.xlane.f32.xlu0 %v472
        %v474 = vpop.xlane.xlu0 %473
        %v475 = vsel %vm441, %v388, -inf
        %476 = vmax.xlane.f32.xlu0 %v475
        %v477 = vpop.xlane.xlu0 %476
        %v478 = vsel %vm441, %v389, -inf
        %479 = vmax.xlane.f32.xlu0 %v478
        %v480 = vpop.xlane.xlu0 %479
        %v481 = vsel %vm441, %v390, -inf
        %482 = vmax.xlane.f32.xlu0 %v481
        %v483 = vpop.xlane.xlu0 %482
        %v484 = vsel %vm441, %v391, -inf
        %485 = vmax.xlane.f32.xlu0 %v484
        %v486 = vpop.xlane.xlu0 %485
        %v487 = vsel %vm441, %v392, -inf
        %488 = vmax.xlane.f32.xlu0 %v487
        %v489 = vpop.xlane.xlu0 %488
        %v490 = vsel %vm441, %v393, -inf
        %491 = vmax.xlane.f32.xlu0 %v490
        %v492 = vpop.xlane.xlu0 %491
        %v493 = vsel %vm441, %v394, -inf
        %494 = vmax.xlane.f32.xlu0 %v493
        %v495 = vpop.xlane.xlu0 %494
        %v496 = vsel %vm441, %v395, -inf
        %497 = vmax.xlane.f32.xlu0 %v496
        %v498 = vpop.xlane.xlu0 %497
        %v499 = vsel %vm441, %v396, -inf
        %500 = vmax.xlane.f32.xlu0 %v499
        %v501 = vpop.xlane.xlu0 %500
        %v502 = vsel %vm441, %v397, -inf
        %503 = vmax.xlane.f32.xlu0 %v502
        %v504 = vpop.xlane.xlu0 %503
        %v505 = vsel %vm441, %v398, -inf
        %506 = vmax.xlane.f32.xlu0 %v505
        %v507 = vpop.xlane.xlu0 %506
        %v508 = vsel %vm441, %v399, -inf
        %509 = vmax.xlane.f32.xlu0 %v508
        %v510 = vpop.xlane.xlu0 %509
        %v511 = vsel %vm441, %v400, -inf
        %512 = vmax.xlane.f32.xlu0 %v511
        %v513 = vpop.xlane.xlu0 %512
        %v514 = vsel %vm441, %v401, -inf
        %515 = vmax.xlane.f32.xlu0 %v514
        %v516 = vpop.xlane.xlu0 %515
        %v517 = vsel %vm441, %v402, -inf
        %518 = vmax.xlane.f32.xlu0 %v517
        %v519 = vpop.xlane.xlu0 %518
        %v520 = vsel %vm441, %v403, -inf
        %521 = vmax.xlane.f32.xlu0 %v520
        %v522 = vpop.xlane.xlu0 %521
        %v523 = vsel %vm441, %v404, -inf
        %524 = vmax.xlane.f32.xlu0 %v523
        %v525 = vpop.xlane.xlu0 %524
        %v526 = vsel %vm441, %v405, -inf
        %527 = vmax.xlane.f32.xlu0 %v526
        %v528 = vpop.xlane.xlu0 %527
        %v529 = vsel %vm441, %v406, -inf
        %530 = vmax.xlane.f32.xlu0 %v529
        %v531 = vpop.xlane.xlu0 %530
        %v532 = vsel %vm441, %v407, -inf
        %533 = vmax.xlane.f32.xlu0 %v532
        %v534 = vpop.xlane.xlu0 %533
        %v535 = vsel %vm441, %v408, -inf
        %536 = vmax.xlane.f32.xlu0 %v535
        %v537 = vpop.xlane.xlu0 %536
        %v538 = vlaneseq
        %v539 = vand.u32 %v538, 127
        %540 = vset.pattern.permute.xlu0 0
        %541 = vperm.xlu0 %540, %v409
        %v542 = vpop.permute.xlu0 %541
        %543 = vset.pattern.permute.xlu0 0
        %544 = vperm.xlu0 %543, %v410
        %v545 = vpop.permute.xlu0 %544
        %546 = vset.pattern.permute.xlu0 0
        %547 = vperm.xlu0 %546, %v411
        %v548 = vpop.permute.xlu0 %547
        %549 = vset.pattern.permute.xlu0 0
        %550 = vperm.xlu0 %549, %v412
        %v551 = vpop.permute.xlu0 %550
        %552 = vset.pattern.permute.xlu0 0
        %553 = vperm.xlu0 %552, %v413
        %v554 = vpop.permute.xlu0 %553
        %555 = vset.pattern.permute.xlu0 0
        %556 = vperm.xlu0 %555, %v414
        %v557 = vpop.permute.xlu0 %556
        %558 = vset.pattern.permute.xlu0 0
        %559 = vperm.xlu0 %558, %v415
        %v560 = vpop.permute.xlu0 %559
        %561 = vset.pattern.permute.xlu0 0
        %562 = vperm.xlu0 %561, %v416
        %v563 = vpop.permute.xlu0 %562
        %564 = vset.pattern.permute.xlu0 0
        %565 = vperm.xlu0 %564, %v417
        %v566 = vpop.permute.xlu0 %565
        %567 = vset.pattern.permute.xlu0 0
        %568 = vperm.xlu0 %567, %v418
        %v569 = vpop.permute.xlu0 %568
        %570 = vset.pattern.permute.xlu0 0
        %571 = vperm.xlu0 %570, %v419
        %v572 = vpop.permute.xlu0 %571
        %573 = vset.pattern.permute.xlu0 0
        %574 = vperm.xlu0 %573, %v420
        %v575 = vpop.permute.xlu0 %574
        %576 = vset.pattern.permute.xlu0 0
        %577 = vperm.xlu0 %576, %v421
        %v578 = vpop.permute.xlu0 %577
        %579 = vset.pattern.permute.xlu0 0
        %580 = vperm.xlu0 %579, %v422
        %v581 = vpop.permute.xlu0 %580
        %582 = vset.pattern.permute.xlu0 0
        %583 = vperm.xlu0 %582, %v423
        %v584 = vpop.permute.xlu0 %583
        %585 = vset.pattern.permute.xlu0 0
        %586 = vperm.xlu0 %585, %v424
        %v587 = vpop.permute.xlu0 %586
        %588 = vset.pattern.permute.xlu0 0
        %589 = vperm.xlu0 %588, %v425
        %v590 = vpop.permute.xlu0 %589
        %591 = vset.pattern.permute.xlu0 0
        %592 = vperm.xlu0 %591, %v426
        %v593 = vpop.permute.xlu0 %592
        %594 = vset.pattern.permute.xlu0 0
        %595 = vperm.xlu0 %594, %v427
        %v596 = vpop.permute.xlu0 %595
        %597 = vset.pattern.permute.xlu0 0
        %598 = vperm.xlu0 %597, %v428
        %v599 = vpop.permute.xlu0 %598
        %600 = vset.pattern.permute.xlu0 0
        %601 = vperm.xlu0 %600, %v429
        %v602 = vpop.permute.xlu0 %601
        %603 = vset.pattern.permute.xlu0 0
        %604 = vperm.xlu0 %603, %v430
        %v605 = vpop.permute.xlu0 %604
        %606 = vset.pattern.permute.xlu0 0
        %607 = vperm.xlu0 %606, %v431
        %v608 = vpop.permute.xlu0 %607
        %609 = vset.pattern.permute.xlu0 0
        %610 = vperm.xlu0 %609, %v432
        %v611 = vpop.permute.xlu0 %610
        %612 = vset.pattern.permute.xlu0 0
        %613 = vperm.xlu0 %612, %v433
        %v614 = vpop.permute.xlu0 %613
        %615 = vset.pattern.permute.xlu0 0
        %616 = vperm.xlu0 %615, %v434
        %v617 = vpop.permute.xlu0 %616
        %618 = vset.pattern.permute.xlu0 0
        %619 = vperm.xlu0 %618, %v435
        %v620 = vpop.permute.xlu0 %619
        %621 = vset.pattern.permute.xlu0 0
        %622 = vperm.xlu0 %621, %v436
        %v623 = vpop.permute.xlu0 %622
        %624 = vset.pattern.permute.xlu0 0
        %625 = vperm.xlu0 %624, %v437
        %v626 = vpop.permute.xlu0 %625
        %627 = vset.pattern.permute.xlu0 0
        %628 = vperm.xlu0 %627, %v438
        %v629 = vpop.permute.xlu0 %628
        %630 = vset.pattern.permute.xlu0 0
        %631 = vperm.xlu0 %630, %v439
        %v632 = vpop.permute.xlu0 %631
        %633 = vset.pattern.permute.xlu0 0
        %634 = vperm.xlu0 %633, %v440
        %v635 = vpop.permute.xlu0 %634
        %vm636 = vcmp.eq.s32.totalorder %v539, %v542
        %vm637 = vcmp.eq.s32.totalorder %v539, %v545
        %vm638 = vcmp.eq.s32.totalorder %v539, %v548
        %vm639 = vcmp.eq.s32.totalorder %v539, %v551
        %vm640 = vcmp.eq.s32.totalorder %v539, %v554
        %vm641 = vcmp.eq.s32.totalorder %v539, %v557
        %vm642 = vcmp.eq.s32.totalorder %v539, %v560
        %vm643 = vcmp.eq.s32.totalorder %v539, %v563
        %vm644 = vcmp.eq.s32.totalorder %v539, %v566
        %vm645 = vcmp.eq.s32.totalorder %v539, %v569
        %vm646 = vcmp.eq.s32.totalorder %v539, %v572
        %vm647 = vcmp.eq.s32.totalorder %v539, %v575
        %vm648 = vcmp.eq.s32.totalorder %v539, %v578
        %vm649 = vcmp.eq.s32.totalorder %v539, %v581
        %vm650 = vcmp.eq.s32.totalorder %v539, %v584
        %vm651 = vcmp.eq.s32.totalorder %v539, %v587
        %vm652 = vcmp.eq.s32.totalorder %v539, %v590
        %vm653 = vcmp.eq.s32.totalorder %v539, %v593
        %vm654 = vcmp.eq.s32.totalorder %v539, %v596
        %vm655 = vcmp.eq.s32.totalorder %v539, %v599
        %vm656 = vcmp.eq.s32.totalorder %v539, %v602
        %vm657 = vcmp.eq.s32.totalorder %v539, %v605
        %vm658 = vcmp.eq.s32.totalorder %v539, %v608
        %vm659 = vcmp.eq.s32.totalorder %v539, %v611
        %vm660 = vcmp.eq.s32.totalorder %v539, %v614
        %vm661 = vcmp.eq.s32.totalorder %v539, %v617
        %vm662 = vcmp.eq.s32.totalorder %v539, %v620
        %vm663 = vcmp.eq.s32.totalorder %v539, %v623
        %vm664 = vcmp.eq.s32.totalorder %v539, %v626
        %vm665 = vcmp.eq.s32.totalorder %v539, %v629
        %vm666 = vcmp.eq.s32.totalorder %v539, %v632
        %vm667 = vcmp.eq.s32.totalorder %v539, %v635
        %v668 = vsel %vm636, %v377, 0.0
        %v669 = vsel %vm637, %v378, 0.0
        %v670 = vsel %vm638, %v379, 0.0
        %v671 = vsel %vm639, %v380, 0.0
        %v672 = vsel %vm640, %v381, 0.0
        %v673 = vsel %vm641, %v382, 0.0
        %v674 = vsel %vm642, %v383, 0.0
        %v675 = vsel %vm643, %v384, 0.0
        %v676 = vsel %vm644, %v385, 0.0
        %v677 = vsel %vm645, %v386, 0.0
        %v678 = vsel %vm646, %v387, 0.0
        %v679 = vsel %vm647, %v388, 0.0
        %v680 = vsel %vm648, %v389, 0.0
        %v681 = vsel %vm649, %v390, 0.0
        %v682 = vsel %vm650, %v391, 0.0
        %v683 = vsel %vm651, %v392, 0.0
        %v684 = vsel %vm652, %v393, 0.0
        %v685 = vsel %vm653, %v394, 0.0
        %v686 = vsel %vm654, %v395, 0.0
        %v687 = vsel %vm655, %v396, 0.0
        %v688 = vsel %vm656, %v397, 0.0
        %v689 = vsel %vm657, %v398, 0.0
        %v690 = vsel %vm658, %v399, 0.0
        %v691 = vsel %vm659, %v400, 0.0
        %v692 = vsel %vm660, %v401, 0.0
        %v693 = vsel %vm661, %v402, 0.0
        %v694 = vsel %vm662, %v403, 0.0
        %v695 = vsel %vm663, %v404, 0.0
        %v696 = vsel %vm664, %v405, 0.0
        %v697 = vsel %vm665, %v406, 0.0
        %v698 = vsel %vm666, %v407, 0.0
        %v699 = vsel %vm667, %v408, 0.0
        %v700 = vsel %vm441, %v668, 0.0
        %701 = vadd.xlane.f32.xlu0 %v700
        %v702 = vpop.xlane.xlu0 %701
        %v703 = vsel %vm441, %v669, 0.0
        %704 = vadd.xlane.f32.xlu0 %v703
        %v705 = vpop.xlane.xlu0 %704
        %v706 = vsel %vm441, %v670, 0.0
        %707 = vadd.xlane.f32.xlu0 %v706
        %v708 = vpop.xlane.xlu0 %707
        %v709 = vsel %vm441, %v671, 0.0
        %710 = vadd.xlane.f32.xlu0 %v709
        %v711 = vpop.xlane.xlu0 %710
        %v712 = vsel %vm441, %v672, 0.0
        %713 = vadd.xlane.f32.xlu0 %v712
        %v714 = vpop.xlane.xlu0 %713
        %v715 = vsel %vm441, %v673, 0.0
        %716 = vadd.xlane.f32.xlu0 %v715
        %v717 = vpop.xlane.xlu0 %716
        %v718 = vsel %vm441, %v674, 0.0
        %719 = vadd.xlane.f32.xlu0 %v718
        %v720 = vpop.xlane.xlu0 %719
        %v721 = vsel %vm441, %v675, 0.0
        %722 = vadd.xlane.f32.xlu0 %v721
        %v723 = vpop.xlane.xlu0 %722
        %v724 = vsel %vm441, %v676, 0.0
        %725 = vadd.xlane.f32.xlu0 %v724
        %v726 = vpop.xlane.xlu0 %725
        %v727 = vsel %vm441, %v677, 0.0
        %728 = vadd.xlane.f32.xlu0 %v727
        %v729 = vpop.xlane.xlu0 %728
        %v730 = vsel %vm441, %v678, 0.0
        %731 = vadd.xlane.f32.xlu0 %v730
        %v732 = vpop.xlane.xlu0 %731
        %v733 = vsel %vm441, %v679, 0.0
        %734 = vadd.xlane.f32.xlu0 %v733
        %v735 = vpop.xlane.xlu0 %734
        %v736 = vsel %vm441, %v680, 0.0
        %737 = vadd.xlane.f32.xlu0 %v736
        %v738 = vpop.xlane.xlu0 %737
        %v739 = vsel %vm441, %v681, 0.0
        %740 = vadd.xlane.f32.xlu0 %v739
        %v741 = vpop.xlane.xlu0 %740
        %v742 = vsel %vm441, %v682, 0.0
        %743 = vadd.xlane.f32.xlu0 %v742
        %v744 = vpop.xlane.xlu0 %743
        %v745 = vsel %vm441, %v683, 0.0
        %746 = vadd.xlane.f32.xlu0 %v745
        %v747 = vpop.xlane.xlu0 %746
        %v748 = vsel %vm441, %v684, 0.0
        %749 = vadd.xlane.f32.xlu0 %v748
        %v750 = vpop.xlane.xlu0 %749
        %v751 = vsel %vm441, %v685, 0.0
        %752 = vadd.xlane.f32.xlu0 %v751
        %v753 = vpop.xlane.xlu0 %752
        %v754 = vsel %vm441, %v686, 0.0
        %755 = vadd.xlane.f32.xlu0 %v754
        %v756 = vpop.xlane.xlu0 %755
        %v757 = vsel %vm441, %v687, 0.0
        %758 = vadd.xlane.f32.xlu0 %v757
        %v759 = vpop.xlane.xlu0 %758
        %v760 = vsel %vm441, %v688, 0.0
        %761 = vadd.xlane.f32.xlu0 %v760
        %v762 = vpop.xlane.xlu0 %761
        %v763 = vsel %vm441, %v689, 0.0
        %764 = vadd.xlane.f32.xlu0 %v763
        %v765 = vpop.xlane.xlu0 %764
        %v766 = vsel %vm441, %v690, 0.0
        %767 = vadd.xlane.f32.xlu0 %v766
        %v768 = vpop.xlane.xlu0 %767
        %v769 = vsel %vm441, %v691, 0.0
        %770 = vadd.xlane.f32.xlu0 %v769
        %v771 = vpop.xlane.xlu0 %770
        %v772 = vsel %vm441, %v692, 0.0
        %773 = vadd.xlane.f32.xlu0 %v772
        %v774 = vpop.xlane.xlu0 %773
        %v775 = vsel %vm441, %v693, 0.0
        %776 = vadd.xlane.f32.xlu0 %v775
        %v777 = vpop.xlane.xlu0 %776
        %v778 = vsel %vm441, %v694, 0.0
        %779 = vadd.xlane.f32.xlu0 %v778
        %v780 = vpop.xlane.xlu0 %779
        %v781 = vsel %vm441, %v695, 0.0
        %782 = vadd.xlane.f32.xlu0 %v781
        %v783 = vpop.xlane.xlu0 %782
        %v784 = vsel %vm441, %v696, 0.0
        %785 = vadd.xlane.f32.xlu0 %v784
        %v786 = vpop.xlane.xlu0 %785
        %v787 = vsel %vm441, %v697, 0.0
        %788 = vadd.xlane.f32.xlu0 %v787
        %v789 = vpop.xlane.xlu0 %788
        %v790 = vsel %vm441, %v698, 0.0
        %791 = vadd.xlane.f32.xlu0 %v790
        %v792 = vpop.xlane.xlu0 %791
        %v793 = vsel %vm441, %v699, 0.0
        %794 = vadd.xlane.f32.xlu0 %v793
        %v795 = vpop.xlane.xlu0 %794
        %v796 = vsub.f32 %v377, %v444
        %v797 = vsub.f32 %v378, %v447
        %v798 = vsub.f32 %v379, %v450
        %v799 = vsub.f32 %v380, %v453
        %v800 = vsub.f32 %v381, %v456
        %v801 = vsub.f32 %v382, %v459
        %v802 = vsub.f32 %v383, %v462
        %v803 = vsub.f32 %v384, %v465
        %v804 = vsub.f32 %v385, %v468
        %v805 = vsub.f32 %v386, %v471
        %v806 = vsub.f32 %v387, %v474
        %v807 = vsub.f32 %v388, %v477
        %v808 = vsub.f32 %v389, %v480
        %v809 = vsub.f32 %v390, %v483
        %v810 = vsub.f32 %v391, %v486
        %v811 = vsub.f32 %v392, %v489
        %v812 = vsub.f32 %v393, %v492
        %v813 = vsub.f32 %v394, %v495
        %v814 = vsub.f32 %v395, %v498
        %v815 = vsub.f32 %v396, %v501
        %v816 = vsub.f32 %v397, %v504
        %v817 = vsub.f32 %v398, %v507
        %v818 = vsub.f32 %v399, %v510
        %v819 = vsub.f32 %v400, %v513
        %v820 = vsub.f32 %v401, %v516
        %v821 = vsub.f32 %v402, %v519
        %v822 = vsub.f32 %v403, %v522
        %v823 = vsub.f32 %v404, %v525
        %v824 = vsub.f32 %v405, %v528
        %v825 = vsub.f32 %v406, %v531
        %v826 = vsub.f32 %v407, %v534
        %v827 = vsub.f32 %v408, %v537
        %v828 = vmul.f32 %v796, 1.442695
        %v829 = vpow.pop %v828
        %v830 = vmul.f32 %v797, 1.442695
        %v831 = vpow.pop %v830
        %v832 = vmul.f32 %v798, 1.442695
        %v833 = vpow.pop %v832
        %v834 = vmul.f32 %v799, 1.442695
        %v835 = vpow.pop %v834
        %v836 = vmul.f32 %v800, 1.442695
        %v837 = vpow.pop %v836
        %v838 = vmul.f32 %v801, 1.442695
        %v839 = vpow.pop %v838
        %v840 = vmul.f32 %v802, 1.442695
        %v841 = vpow.pop %v840
        %v842 = vmul.f32 %v803, 1.442695
        %v843 = vpow.pop %v842
        %v844 = vmul.f32 %v804, 1.442695
        %v845 = vpow.pop %v844
        %v846 = vmul.f32 %v805, 1.442695
        %v847 = vpow.pop %v846
        %v848 = vmul.f32 %v806, 1.442695
        %v849 = vpow.pop %v848
        %v850 = vmul.f32 %v807, 1.442695
        %v851 = vpow.pop %v850
        %v852 = vmul.f32 %v808, 1.442695
        %v853 = vpow.pop %v852
        %v854 = vmul.f32 %v809, 1.442695
        %v855 = vpow.pop %v854
        %v856 = vmul.f32 %v810, 1.442695
        %v857 = vpow.pop %v856
        %v858 = vmul.f32 %v811, 1.442695
        %v859 = vpow.pop %v858
        %v860 = vmul.f32 %v812, 1.442695
        %v861 = vpow.pop %v860
        %v862 = vmul.f32 %v813, 1.442695
        %v863 = vpow.pop %v862
        %v864 = vmul.f32 %v814, 1.442695
        %v865 = vpow.pop %v864
        %v866 = vmul.f32 %v815, 1.442695
        %v867 = vpow.pop %v866
        %v868 = vmul.f32 %v816, 1.442695
        %v869 = vpow.pop %v868
        %v870 = vmul.f32 %v817, 1.442695
        %v871 = vpow.pop %v870
        %v872 = vmul.f32 %v818, 1.442695
        %v873 = vpow.pop %v872
        %v874 = vmul.f32 %v819, 1.442695
        %v875 = vpow.pop %v874
        %v876 = vmul.f32 %v820, 1.442695
        %v877 = vpow.pop %v876
        %v878 = vmul.f32 %v821, 1.442695
        %v879 = vpow.pop %v878
        %v880 = vmul.f32 %v822, 1.442695
        %v881 = vpow.pop %v880
        %v882 = vmul.f32 %v823, 1.442695
        %v883 = vpow.pop %v882
        %v884 = vmul.f32 %v824, 1.442695
        %v885 = vpow.pop %v884
        %v886 = vmul.f32 %v825, 1.442695
        %v887 = vpow.pop %v886
        %v888 = vmul.f32 %v826, 1.442695
        %v889 = vpow.pop %v888
        %v890 = vmul.f32 %v827, 1.442695
        %v891 = vpow.pop %v890
        %v892 = vsel %vm441, %v829, 0.0
        %893 = vadd.xlane.f32.xlu0 %v892
        %v894 = vpop.xlane.xlu0 %893
        %v895 = vsel %vm441, %v831, 0.0
        %896 = vadd.xlane.f32.xlu0 %v895
        %v897 = vpop.xlane.xlu0 %896
        %v898 = vsel %vm441, %v833, 0.0
        %899 = vadd.xlane.f32.xlu0 %v898
        %v900 = vpop.xlane.xlu0 %899
        %v901 = vsel %vm441, %v835, 0.0
        %902 = vadd.xlane.f32.xlu0 %v901
        %v903 = vpop.xlane.xlu0 %902
        %v904 = vsel %vm441, %v837, 0.0
        %905 = vadd.xlane.f32.xlu0 %v904
        %v906 = vpop.xlane.xlu0 %905
        %v907 = vsel %vm441, %v839, 0.0
        %908 = vadd.xlane.f32.xlu0 %v907
        %v909 = vpop.xlane.xlu0 %908
        %v910 = vsel %vm441, %v841, 0.0
        %911 = vadd.xlane.f32.xlu0 %v910
        %v912 = vpop.xlane.xlu0 %911
        %v913 = vsel %vm441, %v843, 0.0
        %914 = vadd.xlane.f32.xlu0 %v913
        %v915 = vpop.xlane.xlu0 %914
        %v916 = vsel %vm441, %v845, 0.0
        %917 = vadd.xlane.f32.xlu0 %v916
        %v918 = vpop.xlane.xlu0 %917
        %v919 = vsel %vm441, %v847, 0.0
        %920 = vadd.xlane.f32.xlu0 %v919
        %v921 = vpop.xlane.xlu0 %920
        %v922 = vsel %vm441, %v849, 0.0
        %923 = vadd.xlane.f32.xlu0 %v922
        %v924 = vpop.xlane.xlu0 %923
        %v925 = vsel %vm441, %v851, 0.0
        %926 = vadd.xlane.f32.xlu0 %v925
        %v927 = vpop.xlane.xlu0 %926
        %v928 = vsel %vm441, %v853, 0.0
        %929 = vadd.xlane.f32.xlu0 %v928
        %v930 = vpop.xlane.xlu0 %929
        %v931 = vsel %vm441, %v855, 0.0
        %932 = vadd.xlane.f32.xlu0 %v931
        %v933 = vpop.xlane.xlu0 %932
        %v934 = vsel %vm441, %v857, 0.0
        %935 = vadd.xlane.f32.xlu0 %v934
        %v936 = vpop.xlane.xlu0 %935
        %v937 = vsel %vm441, %v859, 0.0
        %938 = vadd.xlane.f32.xlu0 %v937
        %v939 = vpop.xlane.xlu0 %938
        %v940 = vsel %vm441, %v861, 0.0
        %941 = vadd.xlane.f32.xlu0 %v940
        %v942 = vpop.xlane.xlu0 %941
        %v943 = vsel %vm441, %v863, 0.0
        %944 = vadd.xlane.f32.xlu0 %v943
        %v945 = vpop.xlane.xlu0 %944
        %v946 = vsel %vm441, %v865, 0.0
        %947 = vadd.xlane.f32.xlu0 %v946
        %v948 = vpop.xlane.xlu0 %947
        %v949 = vsel %vm441, %v867, 0.0
        %950 = vadd.xlane.f32.xlu0 %v949
        %v951 = vpop.xlane.xlu0 %950
        %v952 = vsel %vm441, %v869, 0.0
        %953 = vadd.xlane.f32.xlu0 %v952
        %v954 = vpop.xlane.xlu0 %953
        %v955 = vsel %vm441, %v871, 0.0
        %956 = vadd.xlane.f32.xlu0 %v955
        %v957 = vpop.xlane.xlu0 %956
        %v958 = vsel %vm441, %v873, 0.0
        %959 = vadd.xlane.f32.xlu0 %v958
        %v960 = vpop.xlane.xlu0 %959
        %v961 = vsel %vm441, %v875, 0.0
        %962 = vadd.xlane.f32.xlu0 %v961
        %v963 = vpop.xlane.xlu0 %962
        %v964 = vsel %vm441, %v877, 0.0
        %965 = vadd.xlane.f32.xlu0 %v964
        %v966 = vpop.xlane.xlu0 %965
        %v967 = vsel %vm441, %v879, 0.0
        %968 = vadd.xlane.f32.xlu0 %v967
        %v969 = vpop.xlane.xlu0 %968
        %v970 = vsel %vm441, %v881, 0.0
        %971 = vadd.xlane.f32.xlu0 %v970
        %v972 = vpop.xlane.xlu0 %971
        %v973 = vsel %vm441, %v883, 0.0
        %974 = vadd.xlane.f32.xlu0 %v973
        %v975 = vpop.xlane.xlu0 %974
        %v976 = vsel %vm441, %v885, 0.0
        %977 = vadd.xlane.f32.xlu0 %v976
        %v978 = vpop.xlane.xlu0 %977
        %v979 = vsel %vm441, %v887, 0.0
        %980 = vadd.xlane.f32.xlu0 %v979
        %v981 = vpop.xlane.xlu0 %980
        %v982 = vsel %vm441, %v889, 0.0
        %983 = vadd.xlane.f32.xlu0 %v982
        %v984 = vpop.xlane.xlu0 %983
        %v985 = vsel %vm441, %v891, 0.0
        %986 = vadd.xlane.f32.xlu0 %v985
        %v987 = vpop.xlane.xlu0 %986
        %v988 = vlog2.pop %v894
        %v989 = vmul.f32 %v988, 0.6931472
        %v990 = vlog2.pop %v897
        %v991 = vmul.f32 %v990, 0.6931472
        %v992 = vlog2.pop %v900
        %v993 = vmul.f32 %v992, 0.6931472
        %v994 = vlog2.pop %v903
        %v995 = vmul.f32 %v994, 0.6931472
        %v996 = vlog2.pop %v906
        %v997 = vmul.f32 %v996, 0.6931472
        %v998 = vlog2.pop %v909
        %v999 = vmul.f32 %v998, 0.6931472
        %v1000 = vlog2.pop %v912
        %v1001 = vmul.f32 %v1000, 0.6931472
        %v1002 = vlog2.pop %v915
        %v1003 = vmul.f32 %v1002, 0.6931472
        %v1004 = vlog2.pop %v918
        %v1005 = vmul.f32 %v1004, 0.6931472
        %v1006 = vlog2.pop %v921
        %v1007 = vmul.f32 %v1006, 0.6931472
        %v1008 = vlog2.pop %v924
        %v1009 = vmul.f32 %v1008, 0.6931472
        %v1010 = vlog2.pop %v927
        %v1011 = vmul.f32 %v1010, 0.6931472
        %v1012 = vlog2.pop %v930
        %v1013 = vmul.f32 %v1012, 0.6931472
        %v1014 = vlog2.pop %v933
        %v1015 = vmul.f32 %v1014, 0.6931472
        %v1016 = vlog2.pop %v936
        %v1017 = vmul.f32 %v1016, 0.6931472
        %v1018 = vlog2.pop %v939
        %v1019 = vmul.f32 %v1018, 0.6931472
        %v1020 = vlog2.pop %v942
        %v1021 = vmul.f32 %v1020, 0.6931472
        %v1022 = vlog2.pop %v945
        %v1023 = vmul.f32 %v1022, 0.6931472
        %v1024 = vlog2.pop %v948
        %v1025 = vmul.f32 %v1024, 0.6931472
        %v1026 = vlog2.pop %v951
        %v1027 = vmul.f32 %v1026, 0.6931472
        %v1028 = vlog2.pop %v954
        %v1029 = vmul.f32 %v1028, 0.6931472
        %v1030 = vlog2.pop %v957
        %v1031 = vmul.f32 %v1030, 0.6931472
        %v1032 = vlog2.pop %v960
        %v1033 = vmul.f32 %v1032, 0.6931472
        %v1034 = vlog2.pop %v963
        %v1035 = vmul.f32 %v1034, 0.6931472
        %v1036 = vlog2.pop %v966
        %v1037 = vmul.f32 %v1036, 0.6931472
        %v1038 = vlog2.pop %v969
        %v1039 = vmul.f32 %v1038, 0.6931472
        %v1040 = vlog2.pop %v972
        %v1041 = vmul.f32 %v1040, 0.6931472
        %v1042 = vlog2.pop %v975
        %v1043 = vmul.f32 %v1042, 0.6931472
        %v1044 = vlog2.pop %v978
        %v1045 = vmul.f32 %v1044, 0.6931472
        %v1046 = vlog2.pop %v981
        %v1047 = vmul.f32 %v1046, 0.6931472
        %v1048 = vlog2.pop %v984
        %v1049 = vmul.f32 %v1048, 0.6931472
        %v1050 = vlog2.pop %v987
        %v1051 = vmul.f32 %v1050, 0.6931472
        %v1052 = vadd.f32 %v444, %v989
        %v1053 = vadd.f32 %v447, %v991
        %v1054 = vadd.f32 %v450, %v993
        %v1055 = vadd.f32 %v453, %v995
        %v1056 = vadd.f32 %v456, %v997
        %v1057 = vadd.f32 %v459, %v999
        %v1058 = vadd.f32 %v462, %v1001
        %v1059 = vadd.f32 %v465, %v1003
        %v1060 = vadd.f32 %v468, %v1005
        %v1061 = vadd.f32 %v471, %v1007
        %v1062 = vadd.f32 %v474, %v1009
        %v1063 = vadd.f32 %v477, %v1011
        %v1064 = vadd.f32 %v480, %v1013
        %v1065 = vadd.f32 %v483, %v1015
        %v1066 = vadd.f32 %v486, %v1017
        %v1067 = vadd.f32 %v489, %v1019
        %v1068 = vadd.f32 %v492, %v1021
        %v1069 = vadd.f32 %v495, %v1023
        %v1070 = vadd.f32 %v498, %v1025
        %v1071 = vadd.f32 %v501, %v1027
        %v1072 = vadd.f32 %v504, %v1029
        %v1073 = vadd.f32 %v507, %v1031
        %v1074 = vadd.f32 %v510, %v1033
        %v1075 = vadd.f32 %v513, %v1035
        %v1076 = vadd.f32 %v516, %v1037
        %v1077 = vadd.f32 %v519, %v1039
        %v1078 = vadd.f32 %v522, %v1041
        %v1079 = vadd.f32 %v525, %v1043
        %v1080 = vadd.f32 %v528, %v1045
        %v1081 = vadd.f32 %v531, %v1047
        %v1082 = vadd.f32 %v534, %v1049
        %v1083 = vadd.f32 %v537, %v1051
        %v1084 = vsub.f32 %v1052, %v702
        %v1085 = vsub.f32 %v1053, %v705
        %v1086 = vsub.f32 %v1054, %v708
        %v1087 = vsub.f32 %v1055, %v711
        %v1088 = vsub.f32 %v1056, %v714
        %v1089 = vsub.f32 %v1057, %v717
        %v1090 = vsub.f32 %v1058, %v720
        %v1091 = vsub.f32 %v1059, %v723
        %v1092 = vsub.f32 %v1060, %v726
        %v1093 = vsub.f32 %v1061, %v729
        %v1094 = vsub.f32 %v1062, %v732
        %v1095 = vsub.f32 %v1063, %v735
        %v1096 = vsub.f32 %v1064, %v738
        %v1097 = vsub.f32 %v1065, %v741
        %v1098 = vsub.f32 %v1066, %v744
        %v1099 = vsub.f32 %v1067, %v747
        %v1100 = vsub.f32 %v1068, %v750
        %v1101 = vsub.f32 %v1069, %v753
        %v1102 = vsub.f32 %v1070, %v756
        %v1103 = vsub.f32 %v1071, %v759
        %v1104 = vsub.f32 %v1072, %v762
        %v1105 = vsub.f32 %v1073, %v765
        %v1106 = vsub.f32 %v1074, %v768
        %v1107 = vsub.f32 %v1075, %v771
        %v1108 = vsub.f32 %v1076, %v774
        %v1109 = vsub.f32 %v1077, %v777
        %v1110 = vsub.f32 %v1078, %v780
        %v1111 = vsub.f32 %v1079, %v783
        %v1112 = vsub.f32 %v1080, %v786
        %v1113 = vsub.f32 %v1081, %v789
        %v1114 = vsub.f32 %v1082, %v792
        %v1115 = vsub.f32 %v1083, %v795
        %v1116 = vmax.f32 %v1084, 0.0
        %v1117 = vmax.f32 %v1085, 0.0
        %v1118 = vmax.f32 %v1086, 0.0
        %v1119 = vmax.f32 %v1087, 0.0
        %v1120 = vmax.f32 %v1088, 0.0
        %v1121 = vmax.f32 %v1089, 0.0
        %v1122 = vmax.f32 %v1090, 0.0
        %v1123 = vmax.f32 %v1091, 0.0
        %v1124 = vmax.f32 %v1092, 0.0
        %v1125 = vmax.f32 %v1093, 0.0
        %v1126 = vmax.f32 %v1094, 0.0
        %v1127 = vmax.f32 %v1095, 0.0
        %v1128 = vmax.f32 %v1096, 0.0
        %v1129 = vmax.f32 %v1097, 0.0
        %v1130 = vmax.f32 %v1098, 0.0
        %v1131 = vmax.f32 %v1099, 0.0
        %v1132 = vmax.f32 %v1100, 0.0
        %v1133 = vmax.f32 %v1101, 0.0
        %v1134 = vmax.f32 %v1102, 0.0
        %v1135 = vmax.f32 %v1103, 0.0
        %v1136 = vmax.f32 %v1104, 0.0
        %v1137 = vmax.f32 %v1105, 0.0
        %v1138 = vmax.f32 %v1106, 0.0
        %v1139 = vmax.f32 %v1107, 0.0
        %v1140 = vmax.f32 %v1108, 0.0
        %v1141 = vmax.f32 %v1109, 0.0
        %v1142 = vmax.f32 %v1110, 0.0
        %v1143 = vmax.f32 %v1111, 0.0
        %v1144 = vmax.f32 %v1112, 0.0
        %v1145 = vmax.f32 %v1113, 0.0
        %v1146 = vmax.f32 %v1114, 0.0
        %v1147 = vmax.f32 %v1115, 0.0
        %v1148 = vsub.f32 0.0, %v1116
        %v1149 = vsub.f32 0.0, %v1117
        %v1150 = vsub.f32 0.0, %v1118
        %v1151 = vsub.f32 0.0, %v1119
        %v1152 = vsub.f32 0.0, %v1120
        %v1153 = vsub.f32 0.0, %v1121
        %v1154 = vsub.f32 0.0, %v1122
        %v1155 = vsub.f32 0.0, %v1123
        %v1156 = vsub.f32 0.0, %v1124
        %v1157 = vsub.f32 0.0, %v1125
        %v1158 = vsub.f32 0.0, %v1126
        %v1159 = vsub.f32 0.0, %v1127
        %v1160 = vsub.f32 0.0, %v1128
        %v1161 = vsub.f32 0.0, %v1129
        %v1162 = vsub.f32 0.0, %v1130
        %v1163 = vsub.f32 0.0, %v1131
        %v1164 = vsub.f32 0.0, %v1132
        %v1165 = vsub.f32 0.0, %v1133
        %v1166 = vsub.f32 0.0, %v1134
        %v1167 = vsub.f32 0.0, %v1135
        %v1168 = vsub.f32 0.0, %v1136
        %v1169 = vsub.f32 0.0, %v1137
        %v1170 = vsub.f32 0.0, %v1138
        %v1171 = vsub.f32 0.0, %v1139
        %v1172 = vsub.f32 0.0, %v1140
        %v1173 = vsub.f32 0.0, %v1141
        %v1174 = vsub.f32 0.0, %v1142
        %v1175 = vsub.f32 0.0, %v1143
        %v1176 = vsub.f32 0.0, %v1144
        %v1177 = vsub.f32 0.0, %v1145
        %v1178 = vsub.f32 0.0, %v1146
        %v1179 = vsub.f32 0.0, %v1147
        %v1180 = vmul.f32 %v1148, 1.442695
        %v1181 = vpow.pop %v1180
        %v1182 = vmul.f32 %v1149, 1.442695
        %v1183 = vpow.pop %v1182
        %v1184 = vmul.f32 %v1150, 1.442695
        %v1185 = vpow.pop %v1184
        %v1186 = vmul.f32 %v1151, 1.442695
        %v1187 = vpow.pop %v1186
        %v1188 = vmul.f32 %v1152, 1.442695
        %v1189 = vpow.pop %v1188
        %v1190 = vmul.f32 %v1153, 1.442695
        %v1191 = vpow.pop %v1190
        %v1192 = vmul.f32 %v1154, 1.442695
        %v1193 = vpow.pop %v1192
        %v1194 = vmul.f32 %v1155, 1.442695
        %v1195 = vpow.pop %v1194
        %v1196 = vmul.f32 %v1156, 1.442695
        %v1197 = vpow.pop %v1196
        %v1198 = vmul.f32 %v1157, 1.442695
        %v1199 = vpow.pop %v1198
        %v1200 = vmul.f32 %v1158, 1.442695
        %v1201 = vpow.pop %v1200
        %v1202 = vmul.f32 %v1159, 1.442695
        %v1203 = vpow.pop %v1202
        %v1204 = vmul.f32 %v1160, 1.442695
        %v1205 = vpow.pop %v1204
        %v1206 = vmul.f32 %v1161, 1.442695
        %v1207 = vpow.pop %v1206
        %v1208 = vmul.f32 %v1162, 1.442695
        %v1209 = vpow.pop %v1208
        %v1210 = vmul.f32 %v1163, 1.442695
        %v1211 = vpow.pop %v1210
        %v1212 = vmul.f32 %v1164, 1.442695
        %v1213 = vpow.pop %v1212
        %v1214 = vmul.f32 %v1165, 1.442695
        %v1215 = vpow.pop %v1214
        %v1216 = vmul.f32 %v1166, 1.442695
        %v1217 = vpow.pop %v1216
        %v1218 = vmul.f32 %v1167, 1.442695
        %v1219 = vpow.pop %v1218
        %v1220 = vmul.f32 %v1168, 1.442695
        %v1221 = vpow.pop %v1220
        %v1222 = vmul.f32 %v1169, 1.442695
        %v1223 = vpow.pop %v1222
        %v1224 = vmul.f32 %v1170, 1.442695
        %v1225 = vpow.pop %v1224
        %v1226 = vmul.f32 %v1171, 1.442695
        %v1227 = vpow.pop %v1226
        %v1228 = vmul.f32 %v1172, 1.442695
        %v1229 = vpow.pop %v1228
        %v1230 = vmul.f32 %v1173, 1.442695
        %v1231 = vpow.pop %v1230
        %v1232 = vmul.f32 %v1174, 1.442695
        %v1233 = vpow.pop %v1232
        %v1234 = vmul.f32 %v1175, 1.442695
        %v1235 = vpow.pop %v1234
        %v1236 = vmul.f32 %v1176, 1.442695
        %v1237 = vpow.pop %v1236
        %v1238 = vmul.f32 %v1177, 1.442695
        %v1239 = vpow.pop %v1238
        %v1240 = vmul.f32 %v1178, 1.442695
        %v1241 = vpow.pop %v1240
        %v1242 = vmul.f32 %v1179, 1.442695
        %v1243 = vpow.pop %v1242
        %v1244 = vsub.f32 1.0, %v1181
        %v1245 = vsub.f32 1.0, %v1183
        %v1246 = vsub.f32 1.0, %v1185
        %v1247 = vsub.f32 1.0, %v1187
        %v1248 = vsub.f32 1.0, %v1189
        %v1249 = vsub.f32 1.0, %v1191
        %v1250 = vsub.f32 1.0, %v1193
        %v1251 = vsub.f32 1.0, %v1195
        %v1252 = vsub.f32 1.0, %v1197
        %v1253 = vsub.f32 1.0, %v1199
        %v1254 = vsub.f32 1.0, %v1201
        %v1255 = vsub.f32 1.0, %v1203
        %v1256 = vsub.f32 1.0, %v1205
        %v1257 = vsub.f32 1.0, %v1207
        %v1258 = vsub.f32 1.0, %v1209
        %v1259 = vsub.f32 1.0, %v1211
        %v1260 = vsub.f32 1.0, %v1213
        %v1261 = vsub.f32 1.0, %v1215
        %v1262 = vsub.f32 1.0, %v1217
        %v1263 = vsub.f32 1.0, %v1219
        %v1264 = vsub.f32 1.0, %v1221
        %v1265 = vsub.f32 1.0, %v1223
        %v1266 = vsub.f32 1.0, %v1225
        %v1267 = vsub.f32 1.0, %v1227
        %v1268 = vsub.f32 1.0, %v1229
        %v1269 = vsub.f32 1.0, %v1231
        %v1270 = vsub.f32 1.0, %v1233
        %v1271 = vsub.f32 1.0, %v1235
        %v1272 = vsub.f32 1.0, %v1237
        %v1273 = vsub.f32 1.0, %v1239
        %v1274 = vsub.f32 1.0, %v1241
        %v1275 = vsub.f32 1.0, %v1243
        %v1276 = vmul.f32 %v1244, %v1244
        %v1277 = vmul.f32 %v1245, %v1245
        %v1278 = vmul.f32 %v1246, %v1246
        %v1279 = vmul.f32 %v1247, %v1247
        %v1280 = vmul.f32 %v1248, %v1248
        %v1281 = vmul.f32 %v1249, %v1249
        %v1282 = vmul.f32 %v1250, %v1250
        %v1283 = vmul.f32 %v1251, %v1251
        %v1284 = vmul.f32 %v1252, %v1252
        %v1285 = vmul.f32 %v1253, %v1253
        %v1286 = vmul.f32 %v1254, %v1254
        %v1287 = vmul.f32 %v1255, %v1255
        %v1288 = vmul.f32 %v1256, %v1256
        %v1289 = vmul.f32 %v1257, %v1257
        %v1290 = vmul.f32 %v1258, %v1258
        %v1291 = vmul.f32 %v1259, %v1259
        %v1292 = vmul.f32 %v1260, %v1260
        %v1293 = vmul.f32 %v1261, %v1261
        %v1294 = vmul.f32 %v1262, %v1262
        %v1295 = vmul.f32 %v1263, %v1263
        %v1296 = vmul.f32 %v1264, %v1264
        %v1297 = vmul.f32 %v1265, %v1265
        %v1298 = vmul.f32 %v1266, %v1266
        %v1299 = vmul.f32 %v1267, %v1267
        %v1300 = vmul.f32 %v1268, %v1268
        %v1301 = vmul.f32 %v1269, %v1269
        %v1302 = vmul.f32 %v1270, %v1270
        %v1303 = vmul.f32 %v1271, %v1271
        %v1304 = vmul.f32 %v1272, %v1272
        %v1305 = vmul.f32 %v1273, %v1273
        %v1306 = vmul.f32 %v1274, %v1274
        %v1307 = vmul.f32 %v1275, %v1275
        %v1308 = vmul.f32 %v1276, %v1116
        %v1309 = vmul.f32 %v1277, %v1117
        %v1310 = vmul.f32 %v1278, %v1118
        %v1311 = vmul.f32 %v1279, %v1119
        %v1312 = vmul.f32 %v1280, %v1120
        %v1313 = vmul.f32 %v1281, %v1121
        %v1314 = vmul.f32 %v1282, %v1122
        %v1315 = vmul.f32 %v1283, %v1123
        %v1316 = vmul.f32 %v1284, %v1124
        %v1317 = vmul.f32 %v1285, %v1125
        %v1318 = vmul.f32 %v1286, %v1126
        %v1319 = vmul.f32 %v1287, %v1127
        %v1320 = vmul.f32 %v1288, %v1128
        %v1321 = vmul.f32 %v1289, %v1129
        %v1322 = vmul.f32 %v1290, %v1130
        %v1323 = vmul.f32 %v1291, %v1131
        %v1324 = vmul.f32 %v1292, %v1132
        %v1325 = vmul.f32 %v1293, %v1133
        %v1326 = vmul.f32 %v1294, %v1134
        %v1327 = vmul.f32 %v1295, %v1135
        %v1328 = vmul.f32 %v1296, %v1136
        %v1329 = vmul.f32 %v1297, %v1137
        %v1330 = vmul.f32 %v1298, %v1138
        %v1331 = vmul.f32 %v1299, %v1139
        %v1332 = vmul.f32 %v1300, %v1140
        %v1333 = vmul.f32 %v1301, %v1141
        %v1334 = vmul.f32 %v1302, %v1142
        %v1335 = vmul.f32 %v1303, %v1143
        %v1336 = vmul.f32 %v1304, %v1144
        %v1337 = vmul.f32 %v1305, %v1145
        %v1338 = vmul.f32 %v1306, %v1146
        %v1339 = vmul.f32 %v1307, %v1147
        %s1340 = smul.u32 %s233, 256
        %s1341 = sadd.s32 %s1340, 0
        %v1342 = vlaneseq
        %v1343 = vshrl.u32 %v1342, 7
        %v1344 = vadd.s32 %v1343, 8
        %v1345 = vadd.s32 %v1343, 16
        %v1346 = vadd.s32 %v1343, 24
        %v1347 = vadd.s32 %v1343, 32
        %v1348 = vadd.s32 %v1343, 40
        %v1349 = vadd.s32 %v1343, 48
        %v1350 = vadd.s32 %v1343, 56
        %v1351 = vadd.s32 %v1343, 64
        %v1352 = vadd.s32 %v1343, 72
        %v1353 = vadd.s32 %v1343, 80
        %v1354 = vadd.s32 %v1343, 88
        %v1355 = vadd.s32 %v1343, 96
        %v1356 = vadd.s32 %v1343, 104
        %v1357 = vadd.s32 %v1343, 112
        %v1358 = vadd.s32 %v1343, 120
        %v1359 = vadd.s32 %v1343, 128
        %v1360 = vadd.s32 %v1343, 136
        %v1361 = vadd.s32 %v1343, 144
        %v1362 = vadd.s32 %v1343, 152
        %v1363 = vadd.s32 %v1343, 160
        %v1364 = vadd.s32 %v1343, 168
        %v1365 = vadd.s32 %v1343, 176
        %v1366 = vadd.s32 %v1343, 184
        %v1367 = vadd.s32 %v1343, 192
        %v1368 = vadd.s32 %v1343, 200
        %v1369 = vadd.s32 %v1343, 208
        %v1370 = vadd.s32 %v1343, 216
        %v1371 = vadd.s32 %v1343, 224
        %v1372 = vadd.s32 %v1343, 232
        %v1373 = vadd.s32 %v1343, 240
        %v1374 = vadd.s32 %v1343, 248
        %v1375 = vstv %s1341
        %v1376 = vadd.s32 %v1375, %v1343
        %v1377 = vadd.s32 %v1375, %v1344
        %v1378 = vadd.s32 %v1375, %v1345
        %v1379 = vadd.s32 %v1375, %v1346
        %v1380 = vadd.s32 %v1375, %v1347
        %v1381 = vadd.s32 %v1375, %v1348
        %v1382 = vadd.s32 %v1375, %v1349
        %v1383 = vadd.s32 %v1375, %v1350
        %v1384 = vadd.s32 %v1375, %v1351
        %v1385 = vadd.s32 %v1375, %v1352
        %v1386 = vadd.s32 %v1375, %v1353
        %v1387 = vadd.s32 %v1375, %v1354
        %v1388 = vadd.s32 %v1375, %v1355
        %v1389 = vadd.s32 %v1375, %v1356
        %v1390 = vadd.s32 %v1375, %v1357
        %v1391 = vadd.s32 %v1375, %v1358
        %v1392 = vadd.s32 %v1375, %v1359
        %v1393 = vadd.s32 %v1375, %v1360
        %v1394 = vadd.s32 %v1375, %v1361
        %v1395 = vadd.s32 %v1375, %v1362
        %v1396 = vadd.s32 %v1375, %v1363
        %v1397 = vadd.s32 %v1375, %v1364
        %v1398 = vadd.s32 %v1375, %v1365
        %v1399 = vadd.s32 %v1375, %v1366
        %v1400 = vadd.s32 %v1375, %v1367
        %v1401 = vadd.s32 %v1375, %v1368
        %v1402 = vadd.s32 %v1375, %v1369
        %v1403 = vadd.s32 %v1375, %v1370
        %v1404 = vadd.s32 %v1375, %v1371
        %v1405 = vadd.s32 %v1375, %v1372
        %v1406 = vadd.s32 %v1375, %v1373
        %v1407 = vadd.s32 %v1375, %v1374
        %v1408 = vld [vmem:[#allocation3] sm:$0xff]
        %v1409 = vld [vmem:[#allocation3 + $0x8] sm:$0xff]
        %v1410 = vld [vmem:[#allocation3 + $0x10] sm:$0xff]
        %v1411 = vld [vmem:[#allocation3 + $0x18] sm:$0xff]
        %v1412 = vld [vmem:[#allocation3 + $0x20] sm:$0xff]
        %v1413 = vld [vmem:[#allocation3 + $0x28] sm:$0xff]
        %v1414 = vld [vmem:[#allocation3 + $0x30] sm:$0xff]
        %v1415 = vld [vmem:[#allocation3 + $0x38] sm:$0xff]
        %v1416 = vld [vmem:[#allocation3 + $0x40] sm:$0xff]
        %v1417 = vld [vmem:[#allocation3 + $0x48] sm:$0xff]
        %v1418 = vld [vmem:[#allocation3 + $0x50] sm:$0xff]
        %v1419 = vld [vmem:[#allocation3 + $0x58] sm:$0xff]
        %v1420 = vld [vmem:[#allocation3 + $0x60] sm:$0xff]
        %v1421 = vld [vmem:[#allocation3 + $0x68] sm:$0xff]
        %v1422 = vld [vmem:[#allocation3 + $0x70] sm:$0xff]
        %v1423 = vld [vmem:[#allocation3 + $0x78] sm:$0xff]
        %v1424 = vld [vmem:[#allocation3 + $0x80] sm:$0xff]
        %v1425 = vld [vmem:[#allocation3 + $0x88] sm:$0xff]
        %v1426 = vld [vmem:[#allocation3 + $0x90] sm:$0xff]
        %v1427 = vld [vmem:[#allocation3 + $0x98] sm:$0xff]
        %v1428 = vld [vmem:[#allocation3 + $0xa0] sm:$0xff]
        %v1429 = vld [vmem:[#allocation3 + $0xa8] sm:$0xff]
        %v1430 = vld [vmem:[#allocation3 + $0xb0] sm:$0xff]
        %v1431 = vld [vmem:[#allocation3 + $0xb8] sm:$0xff]
        %v1432 = vld [vmem:[#allocation3 + $0xc0] sm:$0xff]
        %v1433 = vld [vmem:[#allocation3 + $0xc8] sm:$0xff]
        %v1434 = vld [vmem:[#allocation3 + $0xd0] sm:$0xff]
        %v1435 = vld [vmem:[#allocation3 + $0xd8] sm:$0xff]
        %v1436 = vld [vmem:[#allocation3 + $0xe0] sm:$0xff]
        %v1437 = vld [vmem:[#allocation3 + $0xe8] sm:$0xff]
        %v1438 = vld [vmem:[#allocation3 + $0xf0] sm:$0xff]
        %v1439 = vld [vmem:[#allocation3 + $0xf8] sm:$0xff]
        %vm1440 = vcmp.lt.s32.totalorder %v1376, 8
        %vm1441 = vcmp.lt.s32.totalorder %v1377, 8
        %vm1442 = vcmp.lt.s32.totalorder %v1378, 8
        %vm1443 = vcmp.lt.s32.totalorder %v1379, 8
        %vm1444 = vcmp.lt.s32.totalorder %v1380, 8
        %vm1445 = vcmp.lt.s32.totalorder %v1381, 8
        %vm1446 = vcmp.lt.s32.totalorder %v1382, 8
        %vm1447 = vcmp.lt.s32.totalorder %v1383, 8
        %vm1448 = vcmp.lt.s32.totalorder %v1384, 8
        %vm1449 = vcmp.lt.s32.totalorder %v1385, 8
        %vm1450 = vcmp.lt.s32.totalorder %v1386, 8
        %vm1451 = vcmp.lt.s32.totalorder %v1387, 8
        %vm1452 = vcmp.lt.s32.totalorder %v1388, 8
        %vm1453 = vcmp.lt.s32.totalorder %v1389, 8
        %vm1454 = vcmp.lt.s32.totalorder %v1390, 8
        %vm1455 = vcmp.lt.s32.totalorder %v1391, 8
        %vm1456 = vcmp.lt.s32.totalorder %v1392, 8
        %vm1457 = vcmp.lt.s32.totalorder %v1393, 8
        %vm1458 = vcmp.lt.s32.totalorder %v1394, 8
        %vm1459 = vcmp.lt.s32.totalorder %v1395, 8
        %vm1460 = vcmp.lt.s32.totalorder %v1396, 8
        %vm1461 = vcmp.lt.s32.totalorder %v1397, 8
        %vm1462 = vcmp.lt.s32.totalorder %v1398, 8
        %vm1463 = vcmp.lt.s32.totalorder %v1399, 8
        %vm1464 = vcmp.lt.s32.totalorder %v1400, 8
        %vm1465 = vcmp.lt.s32.totalorder %v1401, 8
        %vm1466 = vcmp.lt.s32.totalorder %v1402, 8
        %vm1467 = vcmp.lt.s32.totalorder %v1403, 8
        %vm1468 = vcmp.lt.s32.totalorder %v1404, 8
        %vm1469 = vcmp.lt.s32.totalorder %v1405, 8
        %vm1470 = vcmp.lt.s32.totalorder %v1406, 8
        %vm1471 = vcmp.lt.s32.totalorder %v1407, 8
        %v1472 = vsel %vm1440, %v1308, 0.0
        %v1473 = vsel %vm1441, %v1309, 0.0
        %v1474 = vsel %vm1442, %v1310, 0.0
        %v1475 = vsel %vm1443, %v1311, 0.0
        %v1476 = vsel %vm1444, %v1312, 0.0
        %v1477 = vsel %vm1445, %v1313, 0.0
        %v1478 = vsel %vm1446, %v1314, 0.0
        %v1479 = vsel %vm1447, %v1315, 0.0
        %v1480 = vsel %vm1448, %v1316, 0.0
        %v1481 = vsel %vm1449, %v1317, 0.0
        %v1482 = vsel %vm1450, %v1318, 0.0
        %v1483 = vsel %vm1451, %v1319, 0.0
        %v1484 = vsel %vm1452, %v1320, 0.0
        %v1485 = vsel %vm1453, %v1321, 0.0
        %v1486 = vsel %vm1454, %v1322, 0.0
        %v1487 = vsel %vm1455, %v1323, 0.0
        %v1488 = vsel %vm1456, %v1324, 0.0
        %v1489 = vsel %vm1457, %v1325, 0.0
        %v1490 = vsel %vm1458, %v1326, 0.0
        %v1491 = vsel %vm1459, %v1327, 0.0
        %v1492 = vsel %vm1460, %v1328, 0.0
        %v1493 = vsel %vm1461, %v1329, 0.0
        %v1494 = vsel %vm1462, %v1330, 0.0
        %v1495 = vsel %vm1463, %v1331, 0.0
        %v1496 = vsel %vm1464, %v1332, 0.0
        %v1497 = vsel %vm1465, %v1333, 0.0
        %v1498 = vsel %vm1466, %v1334, 0.0
        %v1499 = vsel %vm1467, %v1335, 0.0
        %v1500 = vsel %vm1468, %v1336, 0.0
        %v1501 = vsel %vm1469, %v1337, 0.0
        %v1502 = vsel %vm1470, %v1338, 0.0
        %v1503 = vsel %vm1471, %v1339, 0.0
        %v1504 = vadd.f32 %v1408, %v1472
        %v1505 = vadd.f32 %v1409, %v1473
        %v1506 = vadd.f32 %v1410, %v1474
        %v1507 = vadd.f32 %v1411, %v1475
        %v1508 = vadd.f32 %v1412, %v1476
        %v1509 = vadd.f32 %v1413, %v1477
        %v1510 = vadd.f32 %v1414, %v1478
        %v1511 = vadd.f32 %v1415, %v1479
        %v1512 = vadd.f32 %v1416, %v1480
        %v1513 = vadd.f32 %v1417, %v1481
        %v1514 = vadd.f32 %v1418, %v1482
        %v1515 = vadd.f32 %v1419, %v1483
        %v1516 = vadd.f32 %v1420, %v1484
        %v1517 = vadd.f32 %v1421, %v1485
        %v1518 = vadd.f32 %v1422, %v1486
        %v1519 = vadd.f32 %v1423, %v1487
        %v1520 = vadd.f32 %v1424, %v1488
        %v1521 = vadd.f32 %v1425, %v1489
        %v1522 = vadd.f32 %v1426, %v1490
        %v1523 = vadd.f32 %v1427, %v1491
        %v1524 = vadd.f32 %v1428, %v1492
        %v1525 = vadd.f32 %v1429, %v1493
        %v1526 = vadd.f32 %v1430, %v1494
        %v1527 = vadd.f32 %v1431, %v1495
        %v1528 = vadd.f32 %v1432, %v1496
        %v1529 = vadd.f32 %v1433, %v1497
        %v1530 = vadd.f32 %v1434, %v1498
        %v1531 = vadd.f32 %v1435, %v1499
        %v1532 = vadd.f32 %v1436, %v1500
        %v1533 = vadd.f32 %v1437, %v1501
        %v1534 = vadd.f32 %v1438, %v1502
        %v1535 = vadd.f32 %v1439, %v1503
        %1536 = vst.msk [vmem:[#allocation3] sm:$0xff] %vm344, %v1504
        %1537 = vst.msk [vmem:[#allocation3 + $0x8] sm:$0xff] %vm344, %v1505
        %1538 = vst.msk [vmem:[#allocation3 + $0x10] sm:$0xff] %vm344, %v1506
        %1539 = vst.msk [vmem:[#allocation3 + $0x18] sm:$0xff] %vm344, %v1507
        %1540 = vst.msk [vmem:[#allocation3 + $0x20] sm:$0xff] %vm344, %v1508
        %1541 = vst.msk [vmem:[#allocation3 + $0x28] sm:$0xff] %vm344, %v1509
        %1542 = vst.msk [vmem:[#allocation3 + $0x30] sm:$0xff] %vm344, %v1510
        %1543 = vst.msk [vmem:[#allocation3 + $0x38] sm:$0xff] %vm344, %v1511
        %1544 = vst.msk [vmem:[#allocation3 + $0x40] sm:$0xff] %vm344, %v1512
        %1545 = vst.msk [vmem:[#allocation3 + $0x48] sm:$0xff] %vm344, %v1513
        %1546 = vst.msk [vmem:[#allocation3 + $0x50] sm:$0xff] %vm344, %v1514
        %1547 = vst.msk [vmem:[#allocation3 + $0x58] sm:$0xff] %vm344, %v1515
        %1548 = vst.msk [vmem:[#allocation3 + $0x60] sm:$0xff] %vm344, %v1516
        %1549 = vst.msk [vmem:[#allocation3 + $0x68] sm:$0xff] %vm344, %v1517
        %1550 = vst.msk [vmem:[#allocation3 + $0x70] sm:$0xff] %vm344, %v1518
        %1551 = vst.msk [vmem:[#allocation3 + $0x78] sm:$0xff] %vm344, %v1519
        %1552 = vst.msk [vmem:[#allocation3 + $0x80] sm:$0xff] %vm344, %v1520
        %1553 = vst.msk [vmem:[#allocation3 + $0x88] sm:$0xff] %vm344, %v1521
        %1554 = vst.msk [vmem:[#allocation3 + $0x90] sm:$0xff] %vm344, %v1522
        %1555 = vst.msk [vmem:[#allocation3 + $0x98] sm:$0xff] %vm344, %v1523
        %1556 = vst.msk [vmem:[#allocation3 + $0xa0] sm:$0xff] %vm344, %v1524
        %1557 = vst.msk [vmem:[#allocation3 + $0xa8] sm:$0xff] %vm344, %v1525
        %1558 = vst.msk [vmem:[#allocation3 + $0xb0] sm:$0xff] %vm344, %v1526
        %1559 = vst.msk [vmem:[#allocation3 + $0xb8] sm:$0xff] %vm344, %v1527
        %1560 = vst.msk [vmem:[#allocation3 + $0xc0] sm:$0xff] %vm344, %v1528
        %1561 = vst.msk [vmem:[#allocation3 + $0xc8] sm:$0xff] %vm344, %v1529
        %1562 = vst.msk [vmem:[#allocation3 + $0xd0] sm:$0xff] %vm344, %v1530
        %1563 = vst.msk [vmem:[#allocation3 + $0xd8] sm:$0xff] %vm344, %v1531
        %1564 = vst.msk [vmem:[#allocation3 + $0xe0] sm:$0xff] %vm344, %v1532
        %1565 = vst.msk [vmem:[#allocation3 + $0xe8] sm:$0xff] %vm344, %v1533
        %1566 = vst.msk [vmem:[#allocation3 + $0xf0] sm:$0xff] %vm344, %v1534
        %1567 = vst.msk [vmem:[#allocation3 + $0xf8] sm:$0xff] %vm344, %v1535
        // Predicated region
        $region37: #{tpu_custom_call.1} parent=27 // pred_check
          %p1568 = pneg %p234
        $region38: #{tpu_custom_call.1} parent=27 // pred_check_branch
          %1570 = sbr.rel (%p1568) target = $region40
        $region39: #{tpu_custom_call.1} parent=27 // pred_region
          %v1571 = vld [vmem:[#allocation3] sm:$0xff]
          %v1572 = vld [vmem:[#allocation3 + $0x8] sm:$0xff]
          %v1573 = vld [vmem:[#allocation3 + $0x10] sm:$0xff]
          %v1574 = vld [vmem:[#allocation3 + $0x18] sm:$0xff]
          %v1575 = vld [vmem:[#allocation3 + $0x20] sm:$0xff]
          %v1576 = vld [vmem:[#allocation3 + $0x28] sm:$0xff]
          %v1577 = vld [vmem:[#allocation3 + $0x30] sm:$0xff]
          %v1578 = vld [vmem:[#allocation3 + $0x38] sm:$0xff]
          %v1579 = vld [vmem:[#allocation3 + $0x40] sm:$0xff]
          %v1580 = vld [vmem:[#allocation3 + $0x48] sm:$0xff]
          %v1581 = vld [vmem:[#allocation3 + $0x50] sm:$0xff]
          %v1582 = vld [vmem:[#allocation3 + $0x58] sm:$0xff]
          %v1583 = vld [vmem:[#allocation3 + $0x60] sm:$0xff]
          %v1584 = vld [vmem:[#allocation3 + $0x68] sm:$0xff]
          %v1585 = vld [vmem:[#allocation3 + $0x70] sm:$0xff]
          %v1586 = vld [vmem:[#allocation3 + $0x78] sm:$0xff]
          %v1587 = vld [vmem:[#allocation3 + $0x80] sm:$0xff]
          %v1588 = vld [vmem:[#allocation3 + $0x88] sm:$0xff]
          %v1589 = vld [vmem:[#allocation3 + $0x90] sm:$0xff]
          %v1590 = vld [vmem:[#allocation3 + $0x98] sm:$0xff]
          %v1591 = vld [vmem:[#allocation3 + $0xa0] sm:$0xff]
          %v1592 = vld [vmem:[#allocation3 + $0xa8] sm:$0xff]
          %v1593 = vld [vmem:[#allocation3 + $0xb0] sm:$0xff]
          %v1594 = vld [vmem:[#allocation3 + $0xb8] sm:$0xff]
          %v1595 = vld [vmem:[#allocation3 + $0xc0] sm:$0xff]
          %v1596 = vld [vmem:[#allocation3 + $0xc8] sm:$0xff]
          %v1597 = vld [vmem:[#allocation3 + $0xd0] sm:$0xff]
          %v1598 = vld [vmem:[#allocation3 + $0xd8] sm:$0xff]
          %v1599 = vld [vmem:[#allocation3 + $0xe0] sm:$0xff]
          %v1600 = vld [vmem:[#allocation3 + $0xe8] sm:$0xff]
          %v1601 = vld [vmem:[#allocation3 + $0xf0] sm:$0xff]
          %v1602 = vld [vmem:[#allocation3 + $0xf8] sm:$0xff]
          %v1603 = vsel %vm344, %v1571, 0.0
          %v1604 = vsel %vm344, %v1572, 0.0
          %v1605 = vadd.f32 %v1603, %v1604
          %v1606 = vsel %vm344, %v1573, 0.0
          %v1607 = vadd.f32 %v1605, %v1606
          %v1608 = vsel %vm344, %v1574, 0.0
          %v1609 = vadd.f32 %v1607, %v1608
          %v1610 = vsel %vm344, %v1575, 0.0
          %v1611 = vadd.f32 %v1609, %v1610
          %v1612 = vsel %vm344, %v1576, 0.0
          %v1613 = vadd.f32 %v1611, %v1612
          %v1614 = vsel %vm344, %v1577, 0.0
          %v1615 = vadd.f32 %v1613, %v1614
          %v1616 = vsel %vm344, %v1578, 0.0
          %v1617 = vadd.f32 %v1615, %v1616
          %v1618 = vsel %vm344, %v1579, 0.0
          %v1619 = vadd.f32 %v1617, %v1618
          %v1620 = vsel %vm344, %v1580, 0.0
          %v1621 = vadd.f32 %v1619, %v1620
          %v1622 = vsel %vm344, %v1581, 0.0
          %v1623 = vadd.f32 %v1621, %v1622
          %v1624 = vsel %vm344, %v1582, 0.0
          %v1625 = vadd.f32 %v1623, %v1624
          %v1626 = vsel %vm344, %v1583, 0.0
          %v1627 = vadd.f32 %v1625, %v1626
          %v1628 = vsel %vm344, %v1584, 0.0
          %v1629 = vadd.f32 %v1627, %v1628
          %v1630 = vsel %vm344, %v1585, 0.0
          %v1631 = vadd.f32 %v1629, %v1630
          %v1632 = vsel %vm344, %v1586, 0.0
          %v1633 = vadd.f32 %v1631, %v1632
          %v1634 = vsel %vm344, %v1587, 0.0
          %v1635 = vadd.f32 %v1633, %v1634
          %v1636 = vsel %vm344, %v1588, 0.0
          %v1637 = vadd.f32 %v1635, %v1636
          %v1638 = vsel %vm344, %v1589, 0.0
          %v1639 = vadd.f32 %v1637, %v1638
          %v1640 = vsel %vm344, %v1590, 0.0
          %v1641 = vadd.f32 %v1639, %v1640
          %v1642 = vsel %vm344, %v1591, 0.0
          %v1643 = vadd.f32 %v1641, %v1642
          %v1644 = vsel %vm344, %v1592, 0.0
          %v1645 = vadd.f32 %v1643, %v1644
          %v1646 = vsel %vm344, %v1593, 0.0
          %v1647 = vadd.f32 %v1645, %v1646
          %v1648 = vsel %vm344, %v1594, 0.0
          %v1649 = vadd.f32 %v1647, %v1648
          %v1650 = vsel %vm344, %v1595, 0.0
          %v1651 = vadd.f32 %v1649, %v1650
          %v1652 = vsel %vm344, %v1596, 0.0
          %v1653 = vadd.f32 %v1651, %v1652
          %v1654 = vsel %vm344, %v1597, 0.0
          %v1655 = vadd.f32 %v1653, %v1654
          %v1656 = vsel %vm344, %v1598, 0.0
          %v1657 = vadd.f32 %v1655, %v1656
          %v1658 = vsel %vm344, %v1599, 0.0
          %v1659 = vadd.f32 %v1657, %v1658
          %v1660 = vsel %vm344, %v1600, 0.0
          %v1661 = vadd.f32 %v1659, %v1660
          %v1662 = vsel %vm344, %v1601, 0.0
          %v1663 = vadd.f32 %v1661, %v1662
          %v1664 = vsel %vm344, %v1602, 0.0
          %v1665 = vadd.f32 %v1663, %v1664
          %1666 = vadd.xlane.f32.xlu0 %v1665
          %v1667 = vpop.xlane.xlu0 %1666
          %v1668 = vrot.slane %v1667, 4
          %v1669 = vadd.f32 %v1667, %v1668
          %v1670 = vrot.slane %v1669, 2
          %v1671 = vadd.f32 %v1669, %v1670
          %v1672 = vrot.slane %v1671, 1
          %v1673 = vadd.f32 %v1671, %v1672
          %s1674 = vtos %v1673
          %v1675 = vstv %s1674
          %1676 = vst [vmem:[%s215] sm:$0xff] %v1675
        $region40: #{tpu_custom_call.1} parent=27 // pred_fallthru
          _
        %s1677 = sand.u32 %s103, 1
        %s1678 = scalar_lea.sflag [#allocation6], %s1677
        %s1679 = sand.u32 %s103, 1
        %s1680 = smul.addr %s1679, 8
        %s1681 = scalar_lea.vmem [#allocation7], %s1680
        // Predicated region
        $region41: #{tpu_custom_call.1} parent=27 // pred_check
          %p1682 = pneg %p113
        $region42: #{tpu_custom_call.1} parent=27 // pred_check_branch
          %1684 = sbr.rel (%p1682) target = $region44
        $region43: #{tpu_custom_call.1} parent=27 // pred_region
          %s1686 = ssub.s32 128, 128
          %1687 = vsyncadd %s1678, %s1686
          %s1688 = smul.addr %s23, 128
          %s1689 = scalar_lea.hbm %s2, %s1688
          %s1691 = sshll.u32 %s1681, 4
          %s1692 = int_to_ptr.vmem [resolvable:$true] %s1691
          %1694 = dma.vmem_to_hbm [thread:$0]  %s1692, 128, %s1689, %s1678
        $region44: #{tpu_custom_call.1} parent=27 // pred_fallthru
          _
      $region28: #{tpu_custom_call.1} parent=5 // pred_fallthru
        _
      %p1695 = scmp.le.s32.totalorder 2, %s14
      // Predicated region
      $region45: #{tpu_custom_call.1} parent=5 // pred_check
        %p1696 = pneg %p1695
      $region46: #{tpu_custom_call.1} parent=5 // pred_check_branch
        %1698 = sbr.rel (%p1696) target = $region48
      $region47: #{tpu_custom_call.1} parent=5 // pred_region
        %s1699 = ssub.s32 %s14, 2
        // Predicated region
        $region49: #{tpu_custom_call.1} parent=47 // pred_check
          %p1700 = pneg %p119
        $region50: #{tpu_custom_call.1} parent=47 // pred_check_branch
          %1702 = sbr.rel (%p1700) target = $region52
        $region51: #{tpu_custom_call.1} parent=47 // pred_region
          %s1703 = sand.u32 %s104, 1
          %s1704 = scalar_lea.sflag [#allocation6], %s1703
          %s1705 = sand.u32 %s104, 1
          %s1706 = smul.addr %s1705, 8
          %s1707 = scalar_lea.vmem [#allocation7], %s1706
          %1708 = dma.done %s1704, 128
        $region52: #{tpu_custom_call.1} parent=47 // pred_fallthru
          _
      $region48: #{tpu_custom_call.1} parent=5 // pred_fallthru
        _
    $region6: #{tpu_custom_call.1} parent=1 // loop_footer
      %s18 = sadd.s32 1, %s14
    $region7: #{tpu_custom_call.1} parent=1 // loop_footer_branch
      %13 = sbr.rel target = $region3
    $region8: #{tpu_custom_call.1} parent=1 // loop_exit
      _
    %1709 = vsyncpa [#allocation5], 1
    %s1710 = scalar_lea.sflag [#allocation5], 1
    %1711 = vsyncpa %s1710, 1
    %1712 = vsyncpa [#allocation6], 1
    %s1713 = scalar_lea.sflag [#allocation6], 1
    %1714 = vsyncpa %s1713, 1

</llo_original>
